<compile_context>
chip_gen: v7x
topology: tpu7x:2x2x1
jax: 0.10.0
libtpu: 0.0.40
codegen_flags: <defaults>
</compile_context>

<pallas_src>
import functools

import jax
import jax.numpy as jnp
from jax.experimental import pallas as pl
from jax.experimental.pallas import tpu as pltpu

BN_EPS = 1e-5  # torch.nn.BatchNorm2d default


def _round_up(x, m):
    return (x + m - 1) // m * m


def _dense_block_kernel(x_ref, gam_ref, bet_ref, w_ref, mask_ref, o_ref, *,
                        num_layers, c0, growth, c_pad, img_w, n_pix, nhw_pad):
    """Fused DenseBlock forward.

    x_ref    : (c_pad, nhw_pad) f32   zero-padded input slab (channels-first)
    gam_ref  : (L, c_pad, 1)    f32   per-layer BN gamma (zero-padded channels)
    bet_ref  : (L, c_pad, 1)    f32   per-layer BN beta  (zero-padded channels)
    w_ref    : (L, G, 9*c_pad)  bf16  per-layer conv weight in im2col layout
    mask_ref : (9, nhw_pad)     f32   per-tap in-image masks (lane axis)
    o_ref    : (c_pad, nhw_pad) f32   output; doubles as the resident slab
    """
    # Initialize the resident channel slab; rows >= c0 start at zero.
    o_ref[...] = x_ref[...]
    inv_n = 1.0 / n_pix  # real pixel count N*H*W (excludes lane padding)

    for l in range(num_layers):          # static unroll; num_layers is small
        c_in = c0 + l * growth
        x = o_ref[...]                                      # (c_pad, nhw_pad)

        # ---- BatchNorm2d (training-mode batch stats), single pass over data.
        # Padded channel rows are all-zero and have gamma=beta=0 -> act rows 0.
        s1 = jnp.sum(x, axis=1, keepdims=True)              # (c_pad, 1)
        s2 = jnp.sum(x * x, axis=1, keepdims=True)
        mean = s1 * inv_n
        var = s2 * inv_n - mean * mean                      # biased variance
        scale = gam_ref[l] * jax.lax.rsqrt(var + BN_EPS)    # (c_pad, 1)
        shift = bet_ref[l] - mean * scale
        act = jnp.maximum(x * scale + shift, 0.0)           # BN + ReLU (f32)

        # ---- 3x3 conv (pad=1, no bias) as ONE im2col matmul: K = 9*c_pad.
        # Each spatial tap is a lane roll of the flattened N*H*W axis plus a
        # border mask; masked / padded entries are exactly zero.
        taps = []
        for t in range(9):
            dy, dx = t // 3 - 1, t % 3 - 1
            d = dy * img_w + dx                             # flat-index offset
            tap = act if d == 0 else pltpu.roll(act, shift=(-d) % nhw_pad, axis=1)
            taps.append(tap * mask_ref[t:t + 1, :])
        patches = jnp.concatenate(taps, axis=0).astype(jnp.bfloat16)  # (9*c_pad, nhw_pad)
        out = jnp.dot(w_ref[l], patches,                    # (growth, nhw_pad)
                      preferred_element_type=jnp.float32)

        # Dense concat (torch.cat dim=1) == write new channels into the slab.
        o_ref[c_in:c_in + growth, :] = out


def _tap_masks(n, h, w, nhw_pad):
    """(9, nhw_pad) f32: mask[t, p] == 1 iff pixel p shifted by tap t stays in-image."""
    p = jnp.arange(nhw_pad, dtype=jnp.int32)
    hh = (p // w) % h
    ww = p % w
    in_img = p < (n * h * w)
    rows = []
    for t in range(9):
        dy, dx = t // 3 - 1, t % 3 - 1
        ok = (in_img
              & (hh + dy >= 0) & (hh + dy < h)
              & (ww + dx >= 0) & (ww + dx < w))
        rows.append(ok)
    return jnp.stack(rows, axis=0).astype(jnp.float32)


def dense_block(x_nhwc, params):
    """DenseBlock.forward. x_nhwc: (N,H,W,C0) f32 -> (N,H,W,C0+L*G) f32."""
    N, H, W, C0 = x_nhwc.shape
    L = len(params)
    G = params[0][2].shape[-1]
    c_final = C0 + L * G
    c_pad = _round_up(c_final, 8)          # sublane-aligned channel slab
    nhw = N * H * W
    nhw_pad = _round_up(nhw, 128)          # lane-dense flattened spatial axis

    # Channels-first slab with flattened spatial (N*H*W) on the lane axis.
    x_cf = jnp.transpose(x_nhwc, (3, 0, 1, 2)).reshape(C0, nhw).astype(jnp.float32)
    x0 = jnp.zeros((c_pad, nhw_pad), jnp.float32).at[:C0, :nhw].set(x_cf)

    gam = jnp.zeros((L, c_pad, 1), jnp.float32)
    bet = jnp.zeros((L, c_pad, 1), jnp.float32)
    wmat = jnp.zeros((L, G, 9 * c_pad), jnp.float32)
    for l, (gamma, beta, weight) in enumerate(params):
        c_in = C0 + l * G
        gam = gam.at[l, :c_in, 0].set(gamma.astype(jnp.float32))
        bet = bet.at[l, :c_in, 0].set(beta.astype(jnp.float32))
        # (3,3,c_in,G) HWIO -> (G,3,3,c_in) -> zero-pad channels -> (G, 9*c_pad)
        w_g = jnp.transpose(weight.astype(jnp.float32), (3, 0, 1, 2))
        w_g = jnp.pad(w_g, ((0, 0), (0, 0), (0, 0), (0, c_pad - c_in)))
        wmat = wmat.at[l].set(w_g.reshape(G, 9 * c_pad))
    wmat = wmat.astype(jnp.bfloat16)       # bf16 MXU operands, f32 accumulation

    masks = _tap_masks(N, H, W, nhw_pad)

    kernel = functools.partial(
        _dense_block_kernel, num_layers=L, c0=C0, growth=G, c_pad=c_pad,
        img_w=W, n_pix=nhw, nhw_pad=nhw_pad)

    # TODO(synk): for non-toy N*H*W, tile spatially over a real grid (halo rows +
    # two-pass BN reduction) and mark the spatial axis "parallel" for v7x's two
    # TensorCores; at these shapes the whole block fits in VMEM, so a single
    # fused step with the slab resident in VMEM is the best schedule.
    slab = pl.pallas_call(
        kernel,
        out_shape=jax.ShapeDtypeStruct((c_pad, nhw_pad), jnp.float32),
        grid=(1,),
        in_specs=[
            pl.BlockSpec((c_pad, nhw_pad), lambda i: (0, 0)),
            pl.BlockSpec((L, c_pad, 1), lambda i: (0, 0, 0)),
            pl.BlockSpec((L, c_pad, 1), lambda i: (0, 0, 0)),
            pl.BlockSpec((L, G, 9 * c_pad), lambda i: (0, 0, 0)),
            pl.BlockSpec((9, nhw_pad), lambda i: (0, 0)),
        ],
        out_specs=pl.BlockSpec((c_pad, nhw_pad), lambda i: (0, 0)),
        compiler_params=pltpu.CompilerParams(
            dimension_semantics=("arbitrary",),
            vmem_limit_bytes=32 * 1024 * 1024),
    )(x0, gam, bet, wmat, masks)

    y = slab[:c_final, :nhw].reshape(c_final, N, H, W)
    return jnp.transpose(y, (1, 2, 3, 0))                   # back to NHWC


def init_params(key, in_channels, growth_rate, num_layers):
    """Deterministic synthetic params: per layer (gamma, beta, conv weight HWIO)."""
    params = []
    c = in_channels
    for _ in range(num_layers):
        key, k1, k2, k3 = jax.random.split(key, 4)
        gamma = 1.0 + 0.1 * jax.random.normal(k1, (c,), jnp.float32)
        beta = 0.1 * jax.random.normal(k2, (c,), jnp.float32)
        weight = 0.1 * jax.random.normal(k3, (3, 3, c, growth_rate), jnp.float32)
        params.append((gamma, beta, weight))
        c += growth_rate
    return params


def _ref_dense_block(x_nhwc, params):
    """Pure-JAX reference of the same forward semantics (for correctness check)."""
    x = x_nhwc
    for gamma, beta, weight in params:
        mean = jnp.mean(x, axis=(0, 1, 2), keepdims=True)
        var = jnp.mean((x - mean) ** 2, axis=(0, 1, 2), keepdims=True)
        act = jnp.maximum((x - mean) * jax.lax.rsqrt(var + BN_EPS) * gamma + beta, 0.0)
        out = jax.lax.conv_general_dilated(
            act, weight, window_strides=(1, 1), padding='SAME',
            dimension_numbers=('NHWC', 'HWIO', 'NHWC'),
            precision=jax.lax.Precision.HIGHEST)
        x = jnp.concatenate([x, out], axis=-1)
    return x


if __name__ == "__main__":
    in_channels, growth_rate, num_layers = 4, 4, 3
    N, H, W = 2, 16, 16

    key = jax.random.PRNGKey(0)
    key, kx = jax.random.split(key)
    x_nchw = jax.random.normal(kx, (N, in_channels, H, W), jnp.float32)  # PyTorch layout
    x_nhwc = jnp.transpose(x_nchw, (0, 2, 3, 1))                          # kernel layout

    params = init_params(key, in_channels, growth_rate, num_layers)

    y = dense_block(x_nhwc, params)
    y = jax.block_until_ready(y)

    assert y.shape == (N, H, W, in_channels + num_layers * growth_rate)

    y_ref = _ref_dense_block(x_nhwc, params)
    max_diff = float(jnp.max(jnp.abs(y - y_ref)))
    # bf16 MXU operands (f32 accumulation) -> keep the tolerance loose vs f32 ref.
    if not bool(jnp.allclose(y, y_ref, atol=3e-2, rtol=3e-2)):
        raise AssertionError(f"mismatch vs reference: max abs diff = {max_diff}")

    print("KERNEL_OK")
</pallas_src>

<mosaic_0001>
module attributes {stable_mosaic.version = 11 : i64} {
  func.func @_dense_block_kernel(%arg0: i32, %arg1: memref<16x512xf32, #tpu.memory_space<vmem>>, %arg2: memref<3x16x1xf32, #tpu.memory_space<vmem>>, %arg3: memref<3x16x1xf32, #tpu.memory_space<vmem>>, %arg4: memref<3x4x144xbf16, #tpu.memory_space<vmem>>, %arg5: memref<9x512xf32, #tpu.memory_space<vmem>>, %arg6: memref<16x512xf32, #tpu.memory_space<vmem>>) attributes {dimension_semantics = [#tpu.dimension_semantics<arbitrary>], iteration_bounds = array<i64: 1>, scalar_prefetch = 0 : i64, scratch_operands = 0 : i64, tpu.core_type = #tpu.core_type<tc>, window_params = [{pipeline_mode = #tpu.pipeline_mode<synchronous>, transform_indices = @transform_0, window_bounds = array<i64: 16, 512>}, {pipeline_mode = #tpu.pipeline_mode<synchronous>, transform_indices = @transform_1, window_bounds = array<i64: 3, 16, 1>}, {pipeline_mode = #tpu.pipeline_mode<synchronous>, transform_indices = @transform_2, window_bounds = array<i64: 3, 16, 1>}, {pipeline_mode = #tpu.pipeline_mode<synchronous>, transform_indices = @transform_3, window_bounds = array<i64: 3, 4, 144>}, {pipeline_mode = #tpu.pipeline_mode<synchronous>, transform_indices = @transform_4, window_bounds = array<i64: 9, 512>}, {pipeline_mode = #tpu.pipeline_mode<synchronous>, transform_indices = @transform_5, window_bounds = array<i64: 16, 512>}]} {
    %c0 = arith.constant 0 : index
    %c0_0 = arith.constant 0 : index
    %0 = vector.load %arg1[%c0, %c0_0] : memref<16x512xf32, #tpu.memory_space<vmem>>, vector<16x512xf32>
    %c0_1 = arith.constant 0 : index
    %c0_2 = arith.constant 0 : index
    %1 = vector.load %arg6[%c0_1, %c0_2] : memref<16x512xf32, #tpu.memory_space<vmem>>, vector<16x512xf32>
    tpu.vector_store %arg6[%c0_1, %c0_2], %0 {strides = array<i32>} : memref<16x512xf32, #tpu.memory_space<vmem>>, vector<16x512xf32>,
    %c0_3 = arith.constant 0 : index
    %c0_4 = arith.constant 0 : index
    %2 = vector.load %arg6[%c0_3, %c0_4] : memref<16x512xf32, #tpu.memory_space<vmem>>, vector<16x512xf32>
    %cst = arith.constant dense<0.000000e+00> : vector<16xf32>
    %3 = vector.multi_reduction <add>, %2, %cst [1] : vector<16x512xf32> to vector<16xf32>
    %4 = vector.shape_cast %3 : vector<16xf32> to vector<16x1xf32>
    %5 = arith.mulf %2, %2 : vector<16x512xf32>
    %cst_5 = arith.constant dense<0.000000e+00> : vector<16xf32>
    %6 = vector.multi_reduction <add>, %5, %cst_5 [1] : vector<16x512xf32> to vector<16xf32>
    %7 = vector.shape_cast %6 : vector<16xf32> to vector<16x1xf32>
    %cst_6 = arith.constant 0.001953125 : f32
    %8 = vector.broadcast %cst_6 : f32 to vector<16x1xf32>
    %9 = arith.mulf %4, %8 : vector<16x1xf32>
    %cst_7 = arith.constant 0.001953125 : f32
    %10 = vector.broadcast %cst_7 : f32 to vector<16x1xf32>
    %11 = arith.mulf %7, %10 : vector<16x1xf32>
    %12 = arith.mulf %9, %9 : vector<16x1xf32>
    %13 = arith.subf %11, %12 : vector<16x1xf32>
    %c0_8 = arith.constant 0 : index
    %c0_9 = arith.constant 0 : index
    %c0_10 = arith.constant 0 : index
    %14 = vector.load %arg2[%c0_8, %c0_9, %c0_10] : memref<3x16x1xf32, #tpu.memory_space<vmem>>, vector<1x16x1xf32>
    %15 = vector.shape_cast %14 : vector<1x16x1xf32> to vector<16x1xf32>
    %cst_11 = arith.constant 9.99999974E-6 : f32
    %16 = vector.broadcast %cst_11 : f32 to vector<16x1xf32>
    %17 = arith.addf %13, %16 : vector<16x1xf32>
    %18 = math.rsqrt %17 : vector<16x1xf32>
    %19 = arith.mulf %15, %18 : vector<16x1xf32>
    %c0_12 = arith.constant 0 : index
    %c0_13 = arith.constant 0 : index
    %c0_14 = arith.constant 0 : index
    %20 = vector.load %arg3[%c0_12, %c0_13, %c0_14] : memref<3x16x1xf32, #tpu.memory_space<vmem>>, vector<1x16x1xf32>
    %21 = vector.shape_cast %20 : vector<1x16x1xf32> to vector<16x1xf32>
    %22 = arith.mulf %9, %19 : vector<16x1xf32>
    %23 = arith.subf %21, %22 : vector<16x1xf32>
    %24 = vector.broadcast %19 : vector<16x1xf32> to vector<16x512xf32>
    %25 = arith.mulf %2, %24 : vector<16x512xf32>
    %26 = vector.broadcast %23 : vector<16x1xf32> to vector<16x512xf32>
    %27 = arith.addf %25, %26 : vector<16x512xf32>
    %cst_15 = arith.constant 0.000000e+00 : f32
    %28 = vector.broadcast %cst_15 : f32 to vector<16x512xf32>
    %29 = arith.maximumf %27, %28 : vector<16x512xf32>
    %c17_i32 = arith.constant 17 : i32
    %30 = tpu.dynamic_rotate %29 by %c17_i32 dim 1 : vector<16x512xf32>, i32 -> vector<16x512xf32>
    %c0_16 = arith.constant 0 : index
    %c0_17 = arith.constant 0 : index
    %31 = vector.load %arg5[%c0_16, %c0_17] : memref<9x512xf32, #tpu.memory_space<vmem>>, vector<1x512xf32>
    %32 = vector.broadcast %31 : vector<1x512xf32> to vector<16x512xf32>
    %33 = arith.mulf %30, %32 : vector<16x512xf32>
    %c16_i32 = arith.constant 16 : i32
    %34 = tpu.dynamic_rotate %29 by %c16_i32 dim 1 : vector<16x512xf32>, i32 -> vector<16x512xf32>
    %c1 = arith.constant 1 : index
    %c0_18 = arith.constant 0 : index
    %35 = vector.load %arg5[%c1, %c0_18] : memref<9x512xf32, #tpu.memory_space<vmem>>, vector<1x512xf32>
    %36 = vector.broadcast %35 : vector<1x512xf32> to vector<16x512xf32>
    %37 = arith.mulf %34, %36 : vector<16x512xf32>
    %c15_i32 = arith.constant 15 : i32
    %38 = tpu.dynamic_rotate %29 by %c15_i32 dim 1 : vector<16x512xf32>, i32 -> vector<16x512xf32>
    %c2 = arith.constant 2 : index
    %c0_19 = arith.constant 0 : index
    %39 = vector.load %arg5[%c2, %c0_19] : memref<9x512xf32, #tpu.memory_space<vmem>>, vector<1x512xf32>
    %40 = vector.broadcast %39 : vector<1x512xf32> to vector<16x512xf32>
    %41 = arith.mulf %38, %40 : vector<16x512xf32>
    %c1_i32 = arith.constant 1 : i32
    %42 = tpu.dynamic_rotate %29 by %c1_i32 dim 1 : vector<16x512xf32>, i32 -> vector<16x512xf32>
    %c3 = arith.constant 3 : index
    %c0_20 = arith.constant 0 : index
    %43 = vector.load %arg5[%c3, %c0_20] : memref<9x512xf32, #tpu.memory_space<vmem>>, vector<1x512xf32>
    %44 = vector.broadcast %43 : vector<1x512xf32> to vector<16x512xf32>
    %45 = arith.mulf %42, %44 : vector<16x512xf32>
    %c4 = arith.constant 4 : index
    %c0_21 = arith.constant 0 : index
    %46 = vector.load %arg5[%c4, %c0_21] : memref<9x512xf32, #tpu.memory_space<vmem>>, vector<1x512xf32>
    %47 = vector.broadcast %46 : vector<1x512xf32> to vector<16x512xf32>
    %48 = arith.mulf %29, %47 : vector<16x512xf32>
    %c511_i32 = arith.constant 511 : i32
    %49 = tpu.dynamic_rotate %29 by %c511_i32 dim 1 : vector<16x512xf32>, i32 -> vector<16x512xf32>
    %c5 = arith.constant 5 : index
    %c0_22 = arith.constant 0 : index
    %50 = vector.load %arg5[%c5, %c0_22] : memref<9x512xf32, #tpu.memory_space<vmem>>, vector<1x512xf32>
    %51 = vector.broadcast %50 : vector<1x512xf32> to vector<16x512xf32>
    %52 = arith.mulf %49, %51 : vector<16x512xf32>
    %c497_i32 = arith.constant 497 : i32
    %53 = tpu.dynamic_rotate %29 by %c497_i32 dim 1 : vector<16x512xf32>, i32 -> vector<16x512xf32>
    %c6 = arith.constant 6 : index
    %c0_23 = arith.constant 0 : index
    %54 = vector.load %arg5[%c6, %c0_23] : memref<9x512xf32, #tpu.memory_space<vmem>>, vector<1x512xf32>
    %55 = vector.broadcast %54 : vector<1x512xf32> to vector<16x512xf32>
    %56 = arith.mulf %53, %55 : vector<16x512xf32>
    %c496_i32 = arith.constant 496 : i32
    %57 = tpu.dynamic_rotate %29 by %c496_i32 dim 1 : vector<16x512xf32>, i32 -> vector<16x512xf32>
    %c7 = arith.constant 7 : index
    %c0_24 = arith.constant 0 : index
    %58 = vector.load %arg5[%c7, %c0_24] : memref<9x512xf32, #tpu.memory_space<vmem>>, vector<1x512xf32>
    %59 = vector.broadcast %58 : vector<1x512xf32> to vector<16x512xf32>
    %60 = arith.mulf %57, %59 : vector<16x512xf32>
    %c495_i32 = arith.constant 495 : i32
    %61 = tpu.dynamic_rotate %29 by %c495_i32 dim 1 : vector<16x512xf32>, i32 -> vector<16x512xf32>
    %c8 = arith.constant 8 : index
    %c0_25 = arith.constant 0 : index
    %62 = vector.load %arg5[%c8, %c0_25] : memref<9x512xf32, #tpu.memory_space<vmem>>, vector<1x512xf32>
    %63 = vector.broadcast %62 : vector<1x512xf32> to vector<16x512xf32>
    %64 = arith.mulf %61, %63 : vector<16x512xf32>
    %65 = tpu.concatenate %33, %37, %41, %45, %48, %52, %56, %60, %64 in 0 : vector<16x512xf32>, vector<16x512xf32>, vector<16x512xf32>, vector<16x512xf32>, vector<16x512xf32>, vector<16x512xf32>, vector<16x512xf32>, vector<16x512xf32>, vector<16x512xf32> -> vector<144x512xf32>
    %66 = arith.truncf %65 : vector<144x512xf32> to vector<144x512xbf16>
    %c0_26 = arith.constant 0 : index
    %c0_27 = arith.constant 0 : index
    %c0_28 = arith.constant 0 : index
    %67 = vector.load %arg4[%c0_26, %c0_27, %c0_28] : memref<3x4x144xbf16, #tpu.memory_space<vmem>>, vector<1x4x144xbf16>
    %68 = vector.shape_cast %67 : vector<1x4x144xbf16> to vector<4x144xbf16>
    %cst_29 = arith.constant dense<0.000000e+00> : vector<4x512xf32>
    %69 = tpu.matmul %68, %66, %cst_29 {dimension_numbers = #tpu.dot_dimension_numbers<[1], [0], [0], [1], [0, 0, 1, 1], [], []>} : vector<4x144xbf16>, vector<144x512xbf16>, vector<4x512xf32> -> vector<4x512xf32>
    %c4_30 = arith.constant 4 : index
    %c0_31 = arith.constant 0 : index
    %70 = vector.load %arg6[%c4_30, %c0_31] : memref<16x512xf32, #tpu.memory_space<vmem>>, vector<4x512xf32>
    tpu.vector_store %arg6[%c4_30, %c0_31], %69 {strides = array<i32>} : memref<16x512xf32, #tpu.memory_space<vmem>>, vector<4x512xf32>,
    %c0_32 = arith.constant 0 : index
    %c0_33 = arith.constant 0 : index
    %71 = vector.load %arg6[%c0_32, %c0_33] : memref<16x512xf32, #tpu.memory_space<vmem>>, vector<16x512xf32>
    %cst_34 = arith.constant dense<0.000000e+00> : vector<16xf32>
    %72 = vector.multi_reduction <add>, %71, %cst_34 [1] : vector<16x512xf32> to vector<16xf32>
    %73 = vector.shape_cast %72 : vector<16xf32> to vector<16x1xf32>
    %74 = arith.mulf %71, %71 : vector<16x512xf32>
    %cst_35 = arith.constant dense<0.000000e+00> : vector<16xf32>
    %75 = vector.multi_reduction <add>, %74, %cst_35 [1] : vector<16x512xf32> to vector<16xf32>
    %76 = vector.shape_cast %75 : vector<16xf32> to vector<16x1xf32>
    %cst_36 = arith.constant 0.001953125 : f32
    %77 = vector.broadcast %cst_36 : f32 to vector<16x1xf32>
    %78 = arith.mulf %73, %77 : vector<16x1xf32>
    %cst_37 = arith.constant 0.001953125 : f32
    %79 = vector.broadcast %cst_37 : f32 to vector<16x1xf32>
    %80 = arith.mulf %76, %79 : vector<16x1xf32>
    %81 = arith.mulf %78, %78 : vector<16x1xf32>
    %82 = arith.subf %80, %81 : vector<16x1xf32>
    %c1_38 = arith.constant 1 : index
    %c0_39 = arith.constant 0 : index
    %c0_40 = arith.constant 0 : index
    %83 = vector.load %arg2[%c1_38, %c0_39, %c0_40] : memref<3x16x1xf32, #tpu.memory_space<vmem>>, vector<1x16x1xf32>
    %84 = vector.shape_cast %83 : vector<1x16x1xf32> to vector<16x1xf32>
    %cst_41 = arith.constant 9.99999974E-6 : f32
    %85 = vector.broadcast %cst_41 : f32 to vector<16x1xf32>
    %86 = arith.addf %82, %85 : vector<16x1xf32>
    %87 = math.rsqrt %86 : vector<16x1xf32>
    %88 = arith.mulf %84, %87 : vector<16x1xf32>
    %c1_42 = arith.constant 1 : index
    %c0_43 = arith.constant 0 : index
    %c0_44 = arith.constant 0 : index
    %89 = vector.load %arg3[%c1_42, %c0_43, %c0_44] : memref<3x16x1xf32, #tpu.memory_space<vmem>>, vector<1x16x1xf32>
    %90 = vector.shape_cast %89 : vector<1x16x1xf32> to vector<16x1xf32>
    %91 = arith.mulf %78, %88 : vector<16x1xf32>
    %92 = arith.subf %90, %91 : vector<16x1xf32>
    %93 = vector.broadcast %88 : vector<16x1xf32> to vector<16x512xf32>
    %94 = arith.mulf %71, %93 : vector<16x512xf32>
    %95 = vector.broadcast %92 : vector<16x1xf32> to vector<16x512xf32>
    %96 = arith.addf %94, %95 : vector<16x512xf32>
    %cst_45 = arith.constant 0.000000e+00 : f32
    %97 = vector.broadcast %cst_45 : f32 to vector<16x512xf32>
    %98 = arith.maximumf %96, %97 : vector<16x512xf32>
    %c17_i32_46 = arith.constant 17 : i32
    %99 = tpu.dynamic_rotate %98 by %c17_i32_46 dim 1 : vector<16x512xf32>, i32 -> vector<16x512xf32>
    %c0_47 = arith.constant 0 : index
    %c0_48 = arith.constant 0 : index
    %100 = vector.load %arg5[%c0_47, %c0_48] : memref<9x512xf32, #tpu.memory_space<vmem>>, vector<1x512xf32>
    %101 = vector.broadcast %100 : vector<1x512xf32> to vector<16x512xf32>
    %102 = arith.mulf %99, %101 : vector<16x512xf32>
    %c16_i32_49 = arith.constant 16 : i32
    %103 = tpu.dynamic_rotate %98 by %c16_i32_49 dim 1 : vector<16x512xf32>, i32 -> vector<16x512xf32>
    %c1_50 = arith.constant 1 : index
    %c0_51 = arith.constant 0 : index
    %104 = vector.load %arg5[%c1_50, %c0_51] : memref<9x512xf32, #tpu.memory_space<vmem>>, vector<1x512xf32>
    %105 = vector.broadcast %104 : vector<1x512xf32> to vector<16x512xf32>
    %106 = arith.mulf %103, %105 : vector<16x512xf32>
    %c15_i32_52 = arith.constant 15 : i32
    %107 = tpu.dynamic_rotate %98 by %c15_i32_52 dim 1 : vector<16x512xf32>, i32 -> vector<16x512xf32>
    %c2_53 = arith.constant 2 : index
    %c0_54 = arith.constant 0 : index
    %108 = vector.load %arg5[%c2_53, %c0_54] : memref<9x512xf32, #tpu.memory_space<vmem>>, vector<1x512xf32>
    %109 = vector.broadcast %108 : vector<1x512xf32> to vector<16x512xf32>
    %110 = arith.mulf %107, %109 : vector<16x512xf32>
    %c1_i32_55 = arith.constant 1 : i32
    %111 = tpu.dynamic_rotate %98 by %c1_i32_55 dim 1 : vector<16x512xf32>, i32 -> vector<16x512xf32>
    %c3_56 = arith.constant 3 : index
    %c0_57 = arith.constant 0 : index
    %112 = vector.load %arg5[%c3_56, %c0_57] : memref<9x512xf32, #tpu.memory_space<vmem>>, vector<1x512xf32>
    %113 = vector.broadcast %112 : vector<1x512xf32> to vector<16x512xf32>
    %114 = arith.mulf %111, %113 : vector<16x512xf32>
    %c4_58 = arith.constant 4 : index
    %c0_59 = arith.constant 0 : index
    %115 = vector.load %arg5[%c4_58, %c0_59] : memref<9x512xf32, #tpu.memory_space<vmem>>, vector<1x512xf32>
    %116 = vector.broadcast %115 : vector<1x512xf32> to vector<16x512xf32>
    %117 = arith.mulf %98, %116 : vector<16x512xf32>
    %c511_i32_60 = arith.constant 511 : i32
    %118 = tpu.dynamic_rotate %98 by %c511_i32_60 dim 1 : vector<16x512xf32>, i32 -> vector<16x512xf32>
    %c5_61 = arith.constant 5 : index
    %c0_62 = arith.constant 0 : index
    %119 = vector.load %arg5[%c5_61, %c0_62] : memref<9x512xf32, #tpu.memory_space<vmem>>, vector<1x512xf32>
    %120 = vector.broadcast %119 : vector<1x512xf32> to vector<16x512xf32>
    %121 = arith.mulf %118, %120 : vector<16x512xf32>
    %c497_i32_63 = arith.constant 497 : i32
    %122 = tpu.dynamic_rotate %98 by %c497_i32_63 dim 1 : vector<16x512xf32>, i32 -> vector<16x512xf32>
    %c6_64 = arith.constant 6 : index
    %c0_65 = arith.constant 0 : index
    %123 = vector.load %arg5[%c6_64, %c0_65] : memref<9x512xf32, #tpu.memory_space<vmem>>, vector<1x512xf32>
    %124 = vector.broadcast %123 : vector<1x512xf32> to vector<16x512xf32>
    %125 = arith.mulf %122, %124 : vector<16x512xf32>
    %c496_i32_66 = arith.constant 496 : i32
    %126 = tpu.dynamic_rotate %98 by %c496_i32_66 dim 1 : vector<16x512xf32>, i32 -> vector<16x512xf32>
    %c7_67 = arith.constant 7 : index
    %c0_68 = arith.constant 0 : index
    %127 = vector.load %arg5[%c7_67, %c0_68] : memref<9x512xf32, #tpu.memory_space<vmem>>, vector<1x512xf32>
    %128 = vector.broadcast %127 : vector<1x512xf32> to vector<16x512xf32>
    %129 = arith.mulf %126, %128 : vector<16x512xf32>
    %c495_i32_69 = arith.constant 495 : i32
    %130 = tpu.dynamic_rotate %98 by %c495_i32_69 dim 1 : vector<16x512xf32>, i32 -> vector<16x512xf32>
    %c8_70 = arith.constant 8 : index
    %c0_71 = arith.constant 0 : index
    %131 = vector.load %arg5[%c8_70, %c0_71] : memref<9x512xf32, #tpu.memory_space<vmem>>, vector<1x512xf32>
    %132 = vector.broadcast %131 : vector<1x512xf32> to vector<16x512xf32>
    %133 = arith.mulf %130, %132 : vector<16x512xf32>
    %134 = tpu.concatenate %102, %106, %110, %114, %117, %121, %125, %129, %133 in 0 : vector<16x512xf32>, vector<16x512xf32>, vector<16x512xf32>, vector<16x512xf32>, vector<16x512xf32>, vector<16x512xf32>, vector<16x512xf32>, vector<16x512xf32>, vector<16x512xf32> -> vector<144x512xf32>
    %135 = arith.truncf %134 : vector<144x512xf32> to vector<144x512xbf16>
    %c1_72 = arith.constant 1 : index
    %c0_73 = arith.constant 0 : index
    %c0_74 = arith.constant 0 : index
    %136 = vector.load %arg4[%c1_72, %c0_73, %c0_74] : memref<3x4x144xbf16, #tpu.memory_space<vmem>>, vector<1x4x144xbf16>
    %137 = vector.shape_cast %136 : vector<1x4x144xbf16> to vector<4x144xbf16>
    %cst_75 = arith.constant dense<0.000000e+00> : vector<4x512xf32>
    %138 = tpu.matmul %137, %135, %cst_75 {dimension_numbers = #tpu.dot_dimension_numbers<[1], [0], [0], [1], [0, 0, 1, 1], [], []>} : vector<4x144xbf16>, vector<144x512xbf16>, vector<4x512xf32> -> vector<4x512xf32>
    %c8_76 = arith.constant 8 : index
    %c0_77 = arith.constant 0 : index
    %139 = vector.load %arg6[%c8_76, %c0_77] : memref<16x512xf32, #tpu.memory_space<vmem>>, vector<4x512xf32>
    tpu.vector_store %arg6[%c8_76, %c0_77], %138 {strides = array<i32>} : memref<16x512xf32, #tpu.memory_space<vmem>>, vector<4x512xf32>,
    %c0_78 = arith.constant 0 : index
    %c0_79 = arith.constant 0 : index
    %140 = vector.load %arg6[%c0_78, %c0_79] : memref<16x512xf32, #tpu.memory_space<vmem>>, vector<16x512xf32>
    %cst_80 = arith.constant dense<0.000000e+00> : vector<16xf32>
    %141 = vector.multi_reduction <add>, %140, %cst_80 [1] : vector<16x512xf32> to vector<16xf32>
    %142 = vector.shape_cast %141 : vector<16xf32> to vector<16x1xf32>
    %143 = arith.mulf %140, %140 : vector<16x512xf32>
    %cst_81 = arith.constant dense<0.000000e+00> : vector<16xf32>
    %144 = vector.multi_reduction <add>, %143, %cst_81 [1] : vector<16x512xf32> to vector<16xf32>
    %145 = vector.shape_cast %144 : vector<16xf32> to vector<16x1xf32>
    %cst_82 = arith.constant 0.001953125 : f32
    %146 = vector.broadcast %cst_82 : f32 to vector<16x1xf32>
    %147 = arith.mulf %142, %146 : vector<16x1xf32>
    %cst_83 = arith.constant 0.001953125 : f32
    %148 = vector.broadcast %cst_83 : f32 to vector<16x1xf32>
    %149 = arith.mulf %145, %148 : vector<16x1xf32>
    %150 = arith.mulf %147, %147 : vector<16x1xf32>
    %151 = arith.subf %149, %150 : vector<16x1xf32>
    %c2_84 = arith.constant 2 : index
    %c0_85 = arith.constant 0 : index
    %c0_86 = arith.constant 0 : index
    %152 = vector.load %arg2[%c2_84, %c0_85, %c0_86] : memref<3x16x1xf32, #tpu.memory_space<vmem>>, vector<1x16x1xf32>
    %153 = vector.shape_cast %152 : vector<1x16x1xf32> to vector<16x1xf32>
    %cst_87 = arith.constant 9.99999974E-6 : f32
    %154 = vector.broadcast %cst_87 : f32 to vector<16x1xf32>
    %155 = arith.addf %151, %154 : vector<16x1xf32>
    %156 = math.rsqrt %155 : vector<16x1xf32>
    %157 = arith.mulf %153, %156 : vector<16x1xf32>
    %c2_88 = arith.constant 2 : index
    %c0_89 = arith.constant 0 : index
    %c0_90 = arith.constant 0 : index
    %158 = vector.load %arg3[%c2_88, %c0_89, %c0_90] : memref<3x16x1xf32, #tpu.memory_space<vmem>>, vector<1x16x1xf32>
    %159 = vector.shape_cast %158 : vector<1x16x1xf32> to vector<16x1xf32>
    %160 = arith.mulf %147, %157 : vector<16x1xf32>
    %161 = arith.subf %159, %160 : vector<16x1xf32>
    %162 = vector.broadcast %157 : vector<16x1xf32> to vector<16x512xf32>
    %163 = arith.mulf %140, %162 : vector<16x512xf32>
    %164 = vector.broadcast %161 : vector<16x1xf32> to vector<16x512xf32>
    %165 = arith.addf %163, %164 : vector<16x512xf32>
    %cst_91 = arith.constant 0.000000e+00 : f32
    %166 = vector.broadcast %cst_91 : f32 to vector<16x512xf32>
    %167 = arith.maximumf %165, %166 : vector<16x512xf32>
    %c17_i32_92 = arith.constant 17 : i32
    %168 = tpu.dynamic_rotate %167 by %c17_i32_92 dim 1 : vector<16x512xf32>, i32 -> vector<16x512xf32>
    %c0_93 = arith.constant 0 : index
    %c0_94 = arith.constant 0 : index
    %169 = vector.load %arg5[%c0_93, %c0_94] : memref<9x512xf32, #tpu.memory_space<vmem>>, vector<1x512xf32>
    %170 = vector.broadcast %169 : vector<1x512xf32> to vector<16x512xf32>
    %171 = arith.mulf %168, %170 : vector<16x512xf32>
    %c16_i32_95 = arith.constant 16 : i32
    %172 = tpu.dynamic_rotate %167 by %c16_i32_95 dim 1 : vector<16x512xf32>, i32 -> vector<16x512xf32>
    %c1_96 = arith.constant 1 : index
    %c0_97 = arith.constant 0 : index
    %173 = vector.load %arg5[%c1_96, %c0_97] : memref<9x512xf32, #tpu.memory_space<vmem>>, vector<1x512xf32>
    %174 = vector.broadcast %173 : vector<1x512xf32> to vector<16x512xf32>
    %175 = arith.mulf %172, %174 : vector<16x512xf32>
    %c15_i32_98 = arith.constant 15 : i32
    %176 = tpu.dynamic_rotate %167 by %c15_i32_98 dim 1 : vector<16x512xf32>, i32 -> vector<16x512xf32>
    %c2_99 = arith.constant 2 : index
    %c0_100 = arith.constant 0 : index
    %177 = vector.load %arg5[%c2_99, %c0_100] : memref<9x512xf32, #tpu.memory_space<vmem>>, vector<1x512xf32>
    %178 = vector.broadcast %177 : vector<1x512xf32> to vector<16x512xf32>
    %179 = arith.mulf %176, %178 : vector<16x512xf32>
    %c1_i32_101 = arith.constant 1 : i32
    %180 = tpu.dynamic_rotate %167 by %c1_i32_101 dim 1 : vector<16x512xf32>, i32 -> vector<16x512xf32>
    %c3_102 = arith.constant 3 : index
    %c0_103 = arith.constant 0 : index
    %181 = vector.load %arg5[%c3_102, %c0_103] : memref<9x512xf32, #tpu.memory_space<vmem>>, vector<1x512xf32>
    %182 = vector.broadcast %181 : vector<1x512xf32> to vector<16x512xf32>
    %183 = arith.mulf %180, %182 : vector<16x512xf32>
    %c4_104 = arith.constant 4 : index
    %c0_105 = arith.constant 0 : index
    %184 = vector.load %arg5[%c4_104, %c0_105] : memref<9x512xf32, #tpu.memory_space<vmem>>, vector<1x512xf32>
    %185 = vector.broadcast %184 : vector<1x512xf32> to vector<16x512xf32>
    %186 = arith.mulf %167, %185 : vector<16x512xf32>
    %c511_i32_106 = arith.constant 511 : i32
    %187 = tpu.dynamic_rotate %167 by %c511_i32_106 dim 1 : vector<16x512xf32>, i32 -> vector<16x512xf32>
    %c5_107 = arith.constant 5 : index
    %c0_108 = arith.constant 0 : index
    %188 = vector.load %arg5[%c5_107, %c0_108] : memref<9x512xf32, #tpu.memory_space<vmem>>, vector<1x512xf32>
    %189 = vector.broadcast %188 : vector<1x512xf32> to vector<16x512xf32>
    %190 = arith.mulf %187, %189 : vector<16x512xf32>
    %c497_i32_109 = arith.constant 497 : i32
    %191 = tpu.dynamic_rotate %167 by %c497_i32_109 dim 1 : vector<16x512xf32>, i32 -> vector<16x512xf32>
    %c6_110 = arith.constant 6 : index
    %c0_111 = arith.constant 0 : index
    %192 = vector.load %arg5[%c6_110, %c0_111] : memref<9x512xf32, #tpu.memory_space<vmem>>, vector<1x512xf32>
    %193 = vector.broadcast %192 : vector<1x512xf32> to vector<16x512xf32>
    %194 = arith.mulf %191, %193 : vector<16x512xf32>
    %c496_i32_112 = arith.constant 496 : i32
    %195 = tpu.dynamic_rotate %167 by %c496_i32_112 dim 1 : vector<16x512xf32>, i32 -> vector<16x512xf32>
    %c7_113 = arith.constant 7 : index
    %c0_114 = arith.constant 0 : index
    %196 = vector.load %arg5[%c7_113, %c0_114] : memref<9x512xf32, #tpu.memory_space<vmem>>, vector<1x512xf32>
    %197 = vector.broadcast %196 : vector<1x512xf32> to vector<16x512xf32>
    %198 = arith.mulf %195, %197 : vector<16x512xf32>
    %c495_i32_115 = arith.constant 495 : i32
    %199 = tpu.dynamic_rotate %167 by %c495_i32_115 dim 1 : vector<16x512xf32>, i32 -> vector<16x512xf32>
    %c8_116 = arith.constant 8 : index
    %c0_117 = arith.constant 0 : index
    %200 = vector.load %arg5[%c8_116, %c0_117] : memref<9x512xf32, #tpu.memory_space<vmem>>, vector<1x512xf32>
    %201 = vector.broadcast %200 : vector<1x512xf32> to vector<16x512xf32>
    %202 = arith.mulf %199, %201 : vector<16x512xf32>
    %203 = tpu.concatenate %171, %175, %179, %183, %186, %190, %194, %198, %202 in 0 : vector<16x512xf32>, vector<16x512xf32>, vector<16x512xf32>, vector<16x512xf32>, vector<16x512xf32>, vector<16x512xf32>, vector<16x512xf32>, vector<16x512xf32>, vector<16x512xf32> -> vector<144x512xf32>
    %204 = arith.truncf %203 : vector<144x512xf32> to vector<144x512xbf16>
    %c2_118 = arith.constant 2 : index
    %c0_119 = arith.constant 0 : index
    %c0_120 = arith.constant 0 : index
    %205 = vector.load %arg4[%c2_118, %c0_119, %c0_120] : memref<3x4x144xbf16, #tpu.memory_space<vmem>>, vector<1x4x144xbf16>
    %206 = vector.shape_cast %205 : vector<1x4x144xbf16> to vector<4x144xbf16>
    %cst_121 = arith.constant dense<0.000000e+00> : vector<4x512xf32>
    %207 = tpu.matmul %206, %204, %cst_121 {dimension_numbers = #tpu.dot_dimension_numbers<[1], [0], [0], [1], [0, 0, 1, 1], [], []>} : vector<4x144xbf16>, vector<144x512xbf16>, vector<4x512xf32> -> vector<4x512xf32>
    %c12 = arith.constant 12 : index
    %c0_122 = arith.constant 0 : index
    %208 = vector.load %arg6[%c12, %c0_122] : memref<16x512xf32, #tpu.memory_space<vmem>>, vector<4x512xf32>
    tpu.vector_store %arg6[%c12, %c0_122], %207 {strides = array<i32>} : memref<16x512xf32, #tpu.memory_space<vmem>>, vector<4x512xf32>,
    return
  }
  func.func @transform_0(%arg0: i32) -> (i32, i32) {
    %c0_i32 = arith.constant 0 : i32
    %c0_i32_0 = arith.constant 0 : i32
    %c0_i32_1 = arith.constant 0 : i32
    return %c0_i32, %c0_i32_0 : i32, i32
  }
  func.func @transform_1(%arg0: i32) -> (i32, i32, i32) {
    %c0_i32 = arith.constant 0 : i32
    %c0_i32_0 = arith.constant 0 : i32
    %c0_i32_1 = arith.constant 0 : i32
    %c0_i32_2 = arith.constant 0 : i32
    return %c0_i32, %c0_i32_0, %c0_i32_1 : i32, i32, i32
  }
  func.func @transform_2(%arg0: i32) -> (i32, i32, i32) {
    %c0_i32 = arith.constant 0 : i32
    %c0_i32_0 = arith.constant 0 : i32
    %c0_i32_1 = arith.constant 0 : i32
    %c0_i32_2 = arith.constant 0 : i32
    return %c0_i32, %c0_i32_0, %c0_i32_1 : i32, i32, i32
  }
  func.func @transform_3(%arg0: i32) -> (i32, i32, i32) {
    %c0_i32 = arith.constant 0 : i32
    %c0_i32_0 = arith.constant 0 : i32
    %c0_i32_1 = arith.constant 0 : i32
    %c0_i32_2 = arith.constant 0 : i32
    return %c0_i32, %c0_i32_0, %c0_i32_1 : i32, i32, i32
  }
  func.func @transform_4(%arg0: i32) -> (i32, i32) {
    %c0_i32 = arith.constant 0 : i32
    %c0_i32_0 = arith.constant 0 : i32
    %c0_i32_1 = arith.constant 0 : i32
    return %c0_i32, %c0_i32_0 : i32, i32
  }
  func.func @transform_5(%arg0: i32) -> (i32, i32) {
    %c0_i32 = arith.constant 0 : i32
    %c0_i32_0 = arith.constant 0 : i32
    %c0_i32_1 = arith.constant 0 : i32
    return %c0_i32, %c0_i32_0 : i32, i32
  }
}

</mosaic_0001>

<llo_original>
// kernel: tpu_custom_call.1
$region0: #{tpu_custom_call.1}
  #allocation0 [shape = 'u32[]', space=smem, size = 0x4, offset = 0x4, fixed_abs, tag = 'smem constant byte address 0x4 - core index']
  #allocation1 [shape = 'u32[144,128]{1,0:T(1,128)}', space=vmem, size = 0x12000, scoped, tag = 'internal scratch']
  %s0 = inlined_call_operand.vmem [shape: f32[16,512], index: 0, kind: input, shape index: {}]
  %s1 = inlined_call_operand.vmem [shape: f32[3,16,1], index: 1, kind: input, shape index: {}]
  %s2 = inlined_call_operand.vmem [shape: f32[3,16,1], index: 2, kind: input, shape index: {}]
  %s3 = inlined_call_operand.vmem [shape: bf16[3,4,144], index: 3, kind: input, shape index: {}]
  %s4 = inlined_call_operand.hbm [shape: f32[9,512], index: 4, kind: input, shape index: {}]
  %s5 = inlined_call_operand.hbm [shape: f32[16,512], index: 5, kind: output, shape index: {}]
  %s6 = sld [smem:[#allocation0]]
  $region34: #{tpu_custom_call.1} parent=0
    _
  %s8 = ssub.s32 1, %s6
  %s9 = scalar_select 0, %s8, %s6
  $region1: #{tpu_custom_call.1} parent=0
    #allocation2 [shape = 'u8[32768]{0}', space=vmem, size = 0x8000, scoped, tag = 'input window, operand 4, single buffered']
    #allocation3 [shape = 's32[1]{0}', space=sflag, size = 0x4, scoped, tag = 'scoped memory for tpu_custom_call.1']
    #allocation4 [shape = 's32[1]{0}', space=sflag, size = 0x4, scoped, tag = 'scoped memory for tpu_custom_call.1']
    #allocation5 [shape = 'u8[32768]{0}', space=vmem, size = 0x8000, scoped, tag = 'output window, operand 0, single buffered']
    %10 = vsyncpa [#allocation3], 0
    %11 = vsyncpa [#allocation4], 0
    // Predicated region
    $region2: #{tpu_custom_call.1} parent=1 // pred_check
      _
    $region3: #{tpu_custom_call.1} parent=1 // pred_check_branch
      %13 = sbr.rel (0) target = $region5
    $region4: #{tpu_custom_call.1} parent=1 // pred_region
      _
    $region5: #{tpu_custom_call.1} parent=1 // pred_fallthru
      _
    // Predicated region
    $region6: #{tpu_custom_call.1} parent=1 // pred_check
      _
    $region7: #{tpu_custom_call.1} parent=1 // pred_check_branch
      %15 = sbr.rel (0) target = $region9
    $region8: #{tpu_custom_call.1} parent=1 // pred_region
      _
    $region9: #{tpu_custom_call.1} parent=1 // pred_fallthru
      _
    // Predicated region
    $region10: #{tpu_custom_call.1} parent=1 // pred_check
      _
    $region11: #{tpu_custom_call.1} parent=1 // pred_check_branch
      %17 = sbr.rel (0) target = $region13
    $region12: #{tpu_custom_call.1} parent=1 // pred_region
      _
    $region13: #{tpu_custom_call.1} parent=1 // pred_fallthru
      _
    // Predicated region
    $region14: #{tpu_custom_call.1} parent=1 // pred_check
      _
    $region15: #{tpu_custom_call.1} parent=1 // pred_check_branch
      %19 = sbr.rel (0) target = $region17
    $region16: #{tpu_custom_call.1} parent=1 // pred_region
      _
    $region17: #{tpu_custom_call.1} parent=1 // pred_fallthru
      _
    // Predicated region
    $region18: #{tpu_custom_call.1} parent=1 // pred_check
      _
    $region19: #{tpu_custom_call.1} parent=1 // pred_check_branch
      %21 = sbr.rel (0) target = $region21
    $region20: #{tpu_custom_call.1} parent=1 // pred_region
      %s23 = ssub.s32 1024, 1024
      %24 = vsyncadd [#allocation3], %s23
      %s25 = sshll.u32 [#allocation2], 4
      %s26 = int_to_ptr.vmem [resolvable:$true] %s25
      %31 = dma.hbm_to_vmem [thread:$0]  %s4, 1024, %s26, [#allocation3], 512, 512, 32
    $region21: #{tpu_custom_call.1} parent=1 // pred_fallthru
      _
    // Predicated region
    $region22: #{tpu_custom_call.1} parent=1 // pred_check
      _
    $region23: #{tpu_custom_call.1} parent=1 // pred_check_branch
      %33 = sbr.rel (0) target = $region25
    $region24: #{tpu_custom_call.1} parent=1 // pred_region
      %34 = dma.done [#allocation3], 1024
    $region25: #{tpu_custom_call.1} parent=1 // pred_fallthru
      _
    %v36 = vld [vmem:[%s0] sm:$0xff]
    %v37 = vld [vmem:[%s0 + $0x8] sm:$0xff]
    %v38 = vld [vmem:[%s0 + $0x10] sm:$0xff]
    %v39 = vld [vmem:[%s0 + $0x18] sm:$0xff]
    %v40 = vld [vmem:[%s0 + $0x20] sm:$0xff]
    %v41 = vld [vmem:[%s0 + $0x28] sm:$0xff]
    %v42 = vld [vmem:[%s0 + $0x30] sm:$0xff]
    %v43 = vld [vmem:[%s0 + $0x38] sm:$0xff]
    %44 = vst [vmem:[#allocation5] sm:$0xff] %v36
    %45 = vst [vmem:[#allocation5 + $0x8] sm:$0xff] %v37
    %46 = vst [vmem:[#allocation5 + $0x10] sm:$0xff] %v38
    %47 = vst [vmem:[#allocation5 + $0x18] sm:$0xff] %v39
    %48 = vst [vmem:[#allocation5 + $0x20] sm:$0xff] %v40
    %49 = vst [vmem:[#allocation5 + $0x28] sm:$0xff] %v41
    %50 = vst [vmem:[#allocation5 + $0x30] sm:$0xff] %v42
    %51 = vst [vmem:[#allocation5 + $0x38] sm:$0xff] %v43
    %v52 = vld [vmem:[#allocation5] sm:$0xff]
    %v53 = vld [vmem:[#allocation5 + $0x8] sm:$0xff]
    %v54 = vld [vmem:[#allocation5 + $0x10] sm:$0xff]
    %v55 = vld [vmem:[#allocation5 + $0x18] sm:$0xff]
    %v56 = vld [vmem:[#allocation5 + $0x20] sm:$0xff]
    %v57 = vld [vmem:[#allocation5 + $0x28] sm:$0xff]
    %v58 = vld [vmem:[#allocation5 + $0x30] sm:$0xff]
    %v59 = vld [vmem:[#allocation5 + $0x38] sm:$0xff]
    %v60 = vadd.f32 %v52, %v53
    %v61 = vadd.f32 %v60, %v54
    %v62 = vadd.f32 %v61, %v55
    %63 = vadd.xlane.f32.xlu0 %v62
    %v64 = vpop.xlane.xlu0 %63
    %v65 = vadd.f32 %v56, %v57
    %v66 = vadd.f32 %v65, %v58
    %v67 = vadd.f32 %v66, %v59
    %68 = vadd.xlane.f32.xlu0 %v67
    %v69 = vpop.xlane.xlu0 %68
    %v70 = vmul.f32 %v52, %v52
    %v71 = vmul.f32 %v53, %v53
    %v72 = vmul.f32 %v54, %v54
    %v73 = vmul.f32 %v55, %v55
    %v74 = vmul.f32 %v56, %v56
    %v75 = vmul.f32 %v57, %v57
    %v76 = vmul.f32 %v58, %v58
    %v77 = vmul.f32 %v59, %v59
    %v78 = vadd.f32 %v70, %v71
    %v79 = vadd.f32 %v78, %v72
    %v80 = vadd.f32 %v79, %v73
    %81 = vadd.xlane.f32.xlu0 %v80
    %v82 = vpop.xlane.xlu0 %81
    %v83 = vadd.f32 %v74, %v75
    %v84 = vadd.f32 %v83, %v76
    %v85 = vadd.f32 %v84, %v77
    %86 = vadd.xlane.f32.xlu0 %v85
    %v87 = vpop.xlane.xlu0 %86
    %v88 = vmul.f32 %v64, 0.001953125
    %v89 = vmul.f32 %v69, 0.001953125
    %v90 = vmul.f32 %v82, 0.001953125
    %v91 = vmul.f32 %v87, 0.001953125
    %v92 = vmul.f32 %v88, %v88
    %v93 = vmul.f32 %v89, %v89
    %v94 = vsub.f32 %v90, %v92
    %v95 = vsub.f32 %v91, %v93
    %v96 = vld [vmem:[%s1] sm:$0xff]
    %v97 = vld [vmem:[%s1 + $0x8] sm:$0xff]
    %v98 = vadd.f32 %v94, 1e-05
    %v99 = vadd.f32 %v95, 1e-05
    %v100 = vrsqrt.pop %v98
    %v101 = vrsqrt.pop %v99
    %v102 = vmul.f32 %v96, %v100
    %v103 = vmul.f32 %v97, %v101
    %v104 = vld [vmem:[%s2] sm:$0xff]
    %v105 = vld [vmem:[%s2 + $0x8] sm:$0xff]
    %v106 = vmul.f32 %v88, %v102
    %v107 = vmul.f32 %v89, %v103
    %v108 = vsub.f32 %v104, %v106
    %v109 = vsub.f32 %v105, %v107
    %111 = vset.pattern.permute.xlu0 0
    %112 = vperm.xlu0 %111, %v102
    %v113 = vpop.permute.xlu0 %112
    %116 = vset.pattern.permute.xlu0 0
    %117 = vperm.xlu0 %116, %v103
    %v118 = vpop.permute.xlu0 %117
    %v120 = vmul.f32 %v52, %v113
    %v121 = vmul.f32 %v53, %v113
    %v122 = vmul.f32 %v54, %v113
    %v123 = vmul.f32 %v55, %v113
    %v124 = vmul.f32 %v56, %v118
    %v125 = vmul.f32 %v57, %v118
    %v126 = vmul.f32 %v58, %v118
    %v127 = vmul.f32 %v59, %v118
    %129 = vset.pattern.permute.xlu0 0
    %130 = vperm.xlu0 %129, %v108
    %v131 = vpop.permute.xlu0 %130
    %134 = vset.pattern.permute.xlu0 0
    %135 = vperm.xlu0 %134, %v109
    %v136 = vpop.permute.xlu0 %135
    %v138 = vadd.f32 %v120, %v131
    %v139 = vadd.f32 %v121, %v131
    %v140 = vadd.f32 %v122, %v131
    %v141 = vadd.f32 %v123, %v131
    %v142 = vadd.f32 %v124, %v136
    %v143 = vadd.f32 %v125, %v136
    %v144 = vadd.f32 %v126, %v136
    %v145 = vadd.f32 %v127, %v136
    %v146 = vmax.f32 %v138, 0.0
    %v147 = vmax.f32 %v139, 0.0
    %v148 = vmax.f32 %v140, 0.0
    %v149 = vmax.f32 %v141, 0.0
    %v150 = vmax.f32 %v142, 0.0
    %v151 = vmax.f32 %v143, 0.0
    %v152 = vmax.f32 %v144, 0.0
    %v153 = vmax.f32 %v145, 0.0
    %154 = vrot.lane.b32.xlu0 %v146, 17
    %v155 = vpop.permute.xlu0 %154
    %156 = vrot.lane.b32.xlu0 %v150, 17
    %v157 = vpop.permute.xlu0 %156
    %158 = vrot.lane.b32.xlu0 %v147, 17
    %v159 = vpop.permute.xlu0 %158
    %160 = vrot.lane.b32.xlu0 %v151, 17
    %v161 = vpop.permute.xlu0 %160
    %162 = vrot.lane.b32.xlu0 %v148, 17
    %v163 = vpop.permute.xlu0 %162
    %164 = vrot.lane.b32.xlu0 %v152, 17
    %v165 = vpop.permute.xlu0 %164
    %166 = vrot.lane.b32.xlu0 %v149, 17
    %v167 = vpop.permute.xlu0 %166
    %168 = vrot.lane.b32.xlu0 %v153, 17
    %v169 = vpop.permute.xlu0 %168
    %v170 = vlaneseq
    %v171 = vand.u32 %v170, 127
    %vm172 = vcmp.lt.s32.totalorder %v171, 17
    %v173 = vsel %vm172, %v163, %v167
    %v174 = vsel %vm172, %v165, %v169
    %v175 = vsel %vm172, %v159, %v163
    %v176 = vsel %vm172, %v161, %v165
    %v177 = vsel %vm172, %v155, %v159
    %v178 = vsel %vm172, %v157, %v161
    %v179 = vsel %vm172, %v167, %v155
    %v180 = vsel %vm172, %v169, %v157
    %v181 = vld [vmem:[#allocation2] ss:$8 sm:$0xf]
    %v183 = vlaneseq
    %v184 = vshrl.u32 %v183, 7
    %v185 = vsub.s32 0, %v184
    %v186 = vrot.slane %v181, %v185
    %v187 = vlaneseq
    %v188 = vshrl.u32 %v187, 7
    %v189 = vsub.s32 1, %v188
    %v190 = vrot.slane %v181, %v189
    %v191 = vlaneseq
    %v192 = vshrl.u32 %v191, 7
    %v193 = vsub.s32 2, %v192
    %v194 = vrot.slane %v181, %v193
    %v195 = vlaneseq
    %v196 = vshrl.u32 %v195, 7
    %v197 = vsub.s32 3, %v196
    %v198 = vrot.slane %v181, %v197
    %v203 = vmul.f32 %v179, %v186
    %v204 = vmul.f32 %v177, %v190
    %v205 = vmul.f32 %v175, %v194
    %v206 = vmul.f32 %v173, %v198
    %v207 = vmul.f32 %v180, %v186
    %v208 = vmul.f32 %v178, %v190
    %v209 = vmul.f32 %v176, %v194
    %v210 = vmul.f32 %v174, %v198
    %211 = vrot.lane.b32.xlu0 %v146, 16
    %v212 = vpop.permute.xlu0 %211
    %213 = vrot.lane.b32.xlu0 %v150, 16
    %v214 = vpop.permute.xlu0 %213
    %215 = vrot.lane.b32.xlu0 %v147, 16
    %v216 = vpop.permute.xlu0 %215
    %217 = vrot.lane.b32.xlu0 %v151, 16
    %v218 = vpop.permute.xlu0 %217
    %219 = vrot.lane.b32.xlu0 %v148, 16
    %v220 = vpop.permute.xlu0 %219
    %221 = vrot.lane.b32.xlu0 %v152, 16
    %v222 = vpop.permute.xlu0 %221
    %223 = vrot.lane.b32.xlu0 %v149, 16
    %v224 = vpop.permute.xlu0 %223
    %225 = vrot.lane.b32.xlu0 %v153, 16
    %v226 = vpop.permute.xlu0 %225
    %vm227 = vcmp.lt.s32.totalorder %v171, 16
    %v228 = vsel %vm227, %v220, %v224
    %v229 = vsel %vm227, %v222, %v226
    %v230 = vsel %vm227, %v216, %v220
    %v231 = vsel %vm227, %v218, %v222
    %v232 = vsel %vm227, %v212, %v216
    %v233 = vsel %vm227, %v214, %v218
    %v234 = vsel %vm227, %v224, %v212
    %v235 = vsel %vm227, %v226, %v214
    %s236 = scalar_lea.vmem [#allocation2], 1
    %v237 = vld [vmem:[%s236] ss:$8 sm:$0xf]
    %v239 = vlaneseq
    %v240 = vshrl.u32 %v239, 7
    %v241 = vsub.s32 0, %v240
    %v242 = vrot.slane %v237, %v241
    %v243 = vlaneseq
    %v244 = vshrl.u32 %v243, 7
    %v245 = vsub.s32 1, %v244
    %v246 = vrot.slane %v237, %v245
    %v247 = vlaneseq
    %v248 = vshrl.u32 %v247, 7
    %v249 = vsub.s32 2, %v248
    %v250 = vrot.slane %v237, %v249
    %v251 = vlaneseq
    %v252 = vshrl.u32 %v251, 7
    %v253 = vsub.s32 3, %v252
    %v254 = vrot.slane %v237, %v253
    %v259 = vmul.f32 %v234, %v242
    %v260 = vmul.f32 %v232, %v246
    %v261 = vmul.f32 %v230, %v250
    %v262 = vmul.f32 %v228, %v254
    %v263 = vmul.f32 %v235, %v242
    %v264 = vmul.f32 %v233, %v246
    %v265 = vmul.f32 %v231, %v250
    %v266 = vmul.f32 %v229, %v254
    %267 = vrot.lane.b32.xlu0 %v146, 15
    %v268 = vpop.permute.xlu0 %267
    %269 = vrot.lane.b32.xlu0 %v150, 15
    %v270 = vpop.permute.xlu0 %269
    %271 = vrot.lane.b32.xlu0 %v147, 15
    %v272 = vpop.permute.xlu0 %271
    %273 = vrot.lane.b32.xlu0 %v151, 15
    %v274 = vpop.permute.xlu0 %273
    %275 = vrot.lane.b32.xlu0 %v148, 15
    %v276 = vpop.permute.xlu0 %275
    %277 = vrot.lane.b32.xlu0 %v152, 15
    %v278 = vpop.permute.xlu0 %277
    %279 = vrot.lane.b32.xlu0 %v149, 15
    %v280 = vpop.permute.xlu0 %279
    %281 = vrot.lane.b32.xlu0 %v153, 15
    %v282 = vpop.permute.xlu0 %281
    %vm283 = vcmp.lt.s32.totalorder %v171, 15
    %v284 = vsel %vm283, %v276, %v280
    %v285 = vsel %vm283, %v278, %v282
    %v286 = vsel %vm283, %v272, %v276
    %v287 = vsel %vm283, %v274, %v278
    %v288 = vsel %vm283, %v268, %v272
    %v289 = vsel %vm283, %v270, %v274
    %v290 = vsel %vm283, %v280, %v268
    %v291 = vsel %vm283, %v282, %v270
    %s292 = scalar_lea.vmem [#allocation2], 2
    %v293 = vld [vmem:[%s292] ss:$8 sm:$0xf]
    %v295 = vlaneseq
    %v296 = vshrl.u32 %v295, 7
    %v297 = vsub.s32 0, %v296
    %v298 = vrot.slane %v293, %v297
    %v299 = vlaneseq
    %v300 = vshrl.u32 %v299, 7
    %v301 = vsub.s32 1, %v300
    %v302 = vrot.slane %v293, %v301
    %v303 = vlaneseq
    %v304 = vshrl.u32 %v303, 7
    %v305 = vsub.s32 2, %v304
    %v306 = vrot.slane %v293, %v305
    %v307 = vlaneseq
    %v308 = vshrl.u32 %v307, 7
    %v309 = vsub.s32 3, %v308
    %v310 = vrot.slane %v293, %v309
    %v315 = vmul.f32 %v290, %v298
    %v316 = vmul.f32 %v288, %v302
    %v317 = vmul.f32 %v286, %v306
    %v318 = vmul.f32 %v284, %v310
    %v319 = vmul.f32 %v291, %v298
    %v320 = vmul.f32 %v289, %v302
    %v321 = vmul.f32 %v287, %v306
    %v322 = vmul.f32 %v285, %v310
    %323 = vrot.lane.b32.xlu0 %v146, 1
    %v324 = vpop.permute.xlu0 %323
    %325 = vrot.lane.b32.xlu0 %v150, 1
    %v326 = vpop.permute.xlu0 %325
    %327 = vrot.lane.b32.xlu0 %v147, 1
    %v328 = vpop.permute.xlu0 %327
    %329 = vrot.lane.b32.xlu0 %v151, 1
    %v330 = vpop.permute.xlu0 %329
    %331 = vrot.lane.b32.xlu0 %v148, 1
    %v332 = vpop.permute.xlu0 %331
    %333 = vrot.lane.b32.xlu0 %v152, 1
    %v334 = vpop.permute.xlu0 %333
    %335 = vrot.lane.b32.xlu0 %v149, 1
    %v336 = vpop.permute.xlu0 %335
    %337 = vrot.lane.b32.xlu0 %v153, 1
    %v338 = vpop.permute.xlu0 %337
    %vm339 = vcmp.lt.s32.totalorder %v171, 1
    %v340 = vsel %vm339, %v332, %v336
    %v341 = vsel %vm339, %v334, %v338
    %v342 = vsel %vm339, %v328, %v332
    %v343 = vsel %vm339, %v330, %v334
    %v344 = vsel %vm339, %v324, %v328
    %v345 = vsel %vm339, %v326, %v330
    %v346 = vsel %vm339, %v336, %v324
    %v347 = vsel %vm339, %v338, %v326
    %s348 = scalar_lea.vmem [#allocation2], 3
    %v349 = vld [vmem:[%s348] ss:$8 sm:$0xf]
    %v351 = vlaneseq
    %v352 = vshrl.u32 %v351, 7
    %v353 = vsub.s32 0, %v352
    %v354 = vrot.slane %v349, %v353
    %v355 = vlaneseq
    %v356 = vshrl.u32 %v355, 7
    %v357 = vsub.s32 1, %v356
    %v358 = vrot.slane %v349, %v357
    %v359 = vlaneseq
    %v360 = vshrl.u32 %v359, 7
    %v361 = vsub.s32 2, %v360
    %v362 = vrot.slane %v349, %v361
    %v363 = vlaneseq
    %v364 = vshrl.u32 %v363, 7
    %v365 = vsub.s32 3, %v364
    %v366 = vrot.slane %v349, %v365
    %v371 = vmul.f32 %v346, %v354
    %v372 = vmul.f32 %v344, %v358
    %v373 = vmul.f32 %v342, %v362
    %v374 = vmul.f32 %v340, %v366
    %v375 = vmul.f32 %v347, %v354
    %v376 = vmul.f32 %v345, %v358
    %v377 = vmul.f32 %v343, %v362
    %v378 = vmul.f32 %v341, %v366
    %s379 = scalar_lea.vmem [#allocation2], 4
    %v380 = vld [vmem:[%s379] ss:$8 sm:$0xf]
    %v382 = vlaneseq
    %v383 = vshrl.u32 %v382, 7
    %v384 = vsub.s32 0, %v383
    %v385 = vrot.slane %v380, %v384
    %v386 = vlaneseq
    %v387 = vshrl.u32 %v386, 7
    %v388 = vsub.s32 1, %v387
    %v389 = vrot.slane %v380, %v388
    %v390 = vlaneseq
    %v391 = vshrl.u32 %v390, 7
    %v392 = vsub.s32 2, %v391
    %v393 = vrot.slane %v380, %v392
    %v394 = vlaneseq
    %v395 = vshrl.u32 %v394, 7
    %v396 = vsub.s32 3, %v395
    %v397 = vrot.slane %v380, %v396
    %v402 = vmul.f32 %v146, %v385
    %v403 = vmul.f32 %v147, %v389
    %v404 = vmul.f32 %v148, %v393
    %v405 = vmul.f32 %v149, %v397
    %v406 = vmul.f32 %v150, %v385
    %v407 = vmul.f32 %v151, %v389
    %v408 = vmul.f32 %v152, %v393
    %v409 = vmul.f32 %v153, %v397
    %410 = vrot.lane.b32.xlu0 %v146, 127
    %v411 = vpop.permute.xlu0 %410
    %412 = vrot.lane.b32.xlu0 %v150, 127
    %v413 = vpop.permute.xlu0 %412
    %414 = vrot.lane.b32.xlu0 %v147, 127
    %v415 = vpop.permute.xlu0 %414
    %416 = vrot.lane.b32.xlu0 %v151, 127
    %v417 = vpop.permute.xlu0 %416
    %418 = vrot.lane.b32.xlu0 %v148, 127
    %v419 = vpop.permute.xlu0 %418
    %420 = vrot.lane.b32.xlu0 %v152, 127
    %v421 = vpop.permute.xlu0 %420
    %422 = vrot.lane.b32.xlu0 %v149, 127
    %v423 = vpop.permute.xlu0 %422
    %424 = vrot.lane.b32.xlu0 %v153, 127
    %v425 = vpop.permute.xlu0 %424
    %vm426 = vcmp.lt.s32.totalorder %v171, 127
    %v427 = vsel %vm426, %v419, %v423
    %v428 = vsel %vm426, %v421, %v425
    %v429 = vsel %vm426, %v415, %v419
    %v430 = vsel %vm426, %v417, %v421
    %v431 = vsel %vm426, %v411, %v415
    %v432 = vsel %vm426, %v413, %v417
    %v433 = vsel %vm426, %v423, %v411
    %v434 = vsel %vm426, %v425, %v413
    %s435 = scalar_lea.vmem [#allocation2], 5
    %v436 = vld [vmem:[%s435] ss:$8 sm:$0xf]
    %v438 = vlaneseq
    %v439 = vshrl.u32 %v438, 7
    %v440 = vsub.s32 0, %v439
    %v441 = vrot.slane %v436, %v440
    %v442 = vlaneseq
    %v443 = vshrl.u32 %v442, 7
    %v444 = vsub.s32 1, %v443
    %v445 = vrot.slane %v436, %v444
    %v446 = vlaneseq
    %v447 = vshrl.u32 %v446, 7
    %v448 = vsub.s32 2, %v447
    %v449 = vrot.slane %v436, %v448
    %v450 = vlaneseq
    %v451 = vshrl.u32 %v450, 7
    %v452 = vsub.s32 3, %v451
    %v453 = vrot.slane %v436, %v452
    %v458 = vmul.f32 %v431, %v441
    %v459 = vmul.f32 %v429, %v445
    %v460 = vmul.f32 %v427, %v449
    %v461 = vmul.f32 %v433, %v453
    %v462 = vmul.f32 %v432, %v441
    %v463 = vmul.f32 %v430, %v445
    %v464 = vmul.f32 %v428, %v449
    %v465 = vmul.f32 %v434, %v453
    %466 = vrot.lane.b32.xlu0 %v146, 113
    %v467 = vpop.permute.xlu0 %466
    %468 = vrot.lane.b32.xlu0 %v150, 113
    %v469 = vpop.permute.xlu0 %468
    %470 = vrot.lane.b32.xlu0 %v147, 113
    %v471 = vpop.permute.xlu0 %470
    %472 = vrot.lane.b32.xlu0 %v151, 113
    %v473 = vpop.permute.xlu0 %472
    %474 = vrot.lane.b32.xlu0 %v148, 113
    %v475 = vpop.permute.xlu0 %474
    %476 = vrot.lane.b32.xlu0 %v152, 113
    %v477 = vpop.permute.xlu0 %476
    %478 = vrot.lane.b32.xlu0 %v149, 113
    %v479 = vpop.permute.xlu0 %478
    %480 = vrot.lane.b32.xlu0 %v153, 113
    %v481 = vpop.permute.xlu0 %480
    %vm482 = vcmp.lt.s32.totalorder %v171, 113
    %v483 = vsel %vm482, %v475, %v479
    %v484 = vsel %vm482, %v477, %v481
    %v485 = vsel %vm482, %v471, %v475
    %v486 = vsel %vm482, %v473, %v477
    %v487 = vsel %vm482, %v467, %v471
    %v488 = vsel %vm482, %v469, %v473
    %v489 = vsel %vm482, %v479, %v467
    %v490 = vsel %vm482, %v481, %v469
    %s491 = scalar_lea.vmem [#allocation2], 6
    %v492 = vld [vmem:[%s491] ss:$8 sm:$0xf]
    %v494 = vlaneseq
    %v495 = vshrl.u32 %v494, 7
    %v496 = vsub.s32 0, %v495
    %v497 = vrot.slane %v492, %v496
    %v498 = vlaneseq
    %v499 = vshrl.u32 %v498, 7
    %v500 = vsub.s32 1, %v499
    %v501 = vrot.slane %v492, %v500
    %v502 = vlaneseq
    %v503 = vshrl.u32 %v502, 7
    %v504 = vsub.s32 2, %v503
    %v505 = vrot.slane %v492, %v504
    %v506 = vlaneseq
    %v507 = vshrl.u32 %v506, 7
    %v508 = vsub.s32 3, %v507
    %v509 = vrot.slane %v492, %v508
    %v514 = vmul.f32 %v487, %v497
    %v515 = vmul.f32 %v485, %v501
    %v516 = vmul.f32 %v483, %v505
    %v517 = vmul.f32 %v489, %v509
    %v518 = vmul.f32 %v488, %v497
    %v519 = vmul.f32 %v486, %v501
    %v520 = vmul.f32 %v484, %v505
    %v521 = vmul.f32 %v490, %v509
    %522 = vrot.lane.b32.xlu0 %v146, 112
    %v523 = vpop.permute.xlu0 %522
    %524 = vrot.lane.b32.xlu0 %v150, 112
    %v525 = vpop.permute.xlu0 %524
    %526 = vrot.lane.b32.xlu0 %v147, 112
    %v527 = vpop.permute.xlu0 %526
    %528 = vrot.lane.b32.xlu0 %v151, 112
    %v529 = vpop.permute.xlu0 %528
    %530 = vrot.lane.b32.xlu0 %v148, 112
    %v531 = vpop.permute.xlu0 %530
    %532 = vrot.lane.b32.xlu0 %v152, 112
    %v533 = vpop.permute.xlu0 %532
    %534 = vrot.lane.b32.xlu0 %v149, 112
    %v535 = vpop.permute.xlu0 %534
    %536 = vrot.lane.b32.xlu0 %v153, 112
    %v537 = vpop.permute.xlu0 %536
    %vm538 = vcmp.lt.s32.totalorder %v171, 112
    %v539 = vsel %vm538, %v531, %v535
    %v540 = vsel %vm538, %v533, %v537
    %v541 = vsel %vm538, %v527, %v531
    %v542 = vsel %vm538, %v529, %v533
    %v543 = vsel %vm538, %v523, %v527
    %v544 = vsel %vm538, %v525, %v529
    %v545 = vsel %vm538, %v535, %v523
    %v546 = vsel %vm538, %v537, %v525
    %s547 = scalar_lea.vmem [#allocation2], 7
    %v548 = vld [vmem:[%s547] ss:$8 sm:$0xf]
    %v550 = vlaneseq
    %v551 = vshrl.u32 %v550, 7
    %v552 = vsub.s32 0, %v551
    %v553 = vrot.slane %v548, %v552
    %v554 = vlaneseq
    %v555 = vshrl.u32 %v554, 7
    %v556 = vsub.s32 1, %v555
    %v557 = vrot.slane %v548, %v556
    %v558 = vlaneseq
    %v559 = vshrl.u32 %v558, 7
    %v560 = vsub.s32 2, %v559
    %v561 = vrot.slane %v548, %v560
    %v562 = vlaneseq
    %v563 = vshrl.u32 %v562, 7
    %v564 = vsub.s32 3, %v563
    %v565 = vrot.slane %v548, %v564
    %v570 = vmul.f32 %v543, %v553
    %v571 = vmul.f32 %v541, %v557
    %v572 = vmul.f32 %v539, %v561
    %v573 = vmul.f32 %v545, %v565
    %v574 = vmul.f32 %v544, %v553
    %v575 = vmul.f32 %v542, %v557
    %v576 = vmul.f32 %v540, %v561
    %v577 = vmul.f32 %v546, %v565
    %578 = vrot.lane.b32.xlu0 %v146, 111
    %v579 = vpop.permute.xlu0 %578
    %580 = vrot.lane.b32.xlu0 %v150, 111
    %v581 = vpop.permute.xlu0 %580
    %582 = vrot.lane.b32.xlu0 %v147, 111
    %v583 = vpop.permute.xlu0 %582
    %584 = vrot.lane.b32.xlu0 %v151, 111
    %v585 = vpop.permute.xlu0 %584
    %586 = vrot.lane.b32.xlu0 %v148, 111
    %v587 = vpop.permute.xlu0 %586
    %588 = vrot.lane.b32.xlu0 %v152, 111
    %v589 = vpop.permute.xlu0 %588
    %590 = vrot.lane.b32.xlu0 %v149, 111
    %v591 = vpop.permute.xlu0 %590
    %592 = vrot.lane.b32.xlu0 %v153, 111
    %v593 = vpop.permute.xlu0 %592
    %vm594 = vcmp.lt.s32.totalorder %v171, 111
    %v595 = vsel %vm594, %v587, %v591
    %v596 = vsel %vm594, %v589, %v593
    %v597 = vsel %vm594, %v583, %v587
    %v598 = vsel %vm594, %v585, %v589
    %v599 = vsel %vm594, %v579, %v583
    %v600 = vsel %vm594, %v581, %v585
    %v601 = vsel %vm594, %v591, %v579
    %v602 = vsel %vm594, %v593, %v581
    %s603 = scalar_lea.vmem [#allocation2], 32
    %v604 = vld [vmem:[%s603] ss:$8 sm:$0xf]
    %v606 = vlaneseq
    %v607 = vshrl.u32 %v606, 7
    %v608 = vsub.s32 0, %v607
    %v609 = vrot.slane %v604, %v608
    %v610 = vlaneseq
    %v611 = vshrl.u32 %v610, 7
    %v612 = vsub.s32 1, %v611
    %v613 = vrot.slane %v604, %v612
    %v614 = vlaneseq
    %v615 = vshrl.u32 %v614, 7
    %v616 = vsub.s32 2, %v615
    %v617 = vrot.slane %v604, %v616
    %v618 = vlaneseq
    %v619 = vshrl.u32 %v618, 7
    %v620 = vsub.s32 3, %v619
    %v621 = vrot.slane %v604, %v620
    %v626 = vmul.f32 %v599, %v609
    %v627 = vmul.f32 %v597, %v613
    %v628 = vmul.f32 %v595, %v617
    %v629 = vmul.f32 %v601, %v621
    %v630 = vmul.f32 %v600, %v609
    %v631 = vmul.f32 %v598, %v613
    %v632 = vmul.f32 %v596, %v617
    %v633 = vmul.f32 %v602, %v621
    %v634 = vpack.c.bf16 %v207, %v203
    %v635 = vpack.c.bf16 %v208, %v204
    %v636 = vpack.c.bf16 %v209, %v205
    %v637 = vpack.c.bf16 %v210, %v206
    %v638 = vpack.c.bf16 %v263, %v259
    %v639 = vpack.c.bf16 %v264, %v260
    %v640 = vpack.c.bf16 %v265, %v261
    %v641 = vpack.c.bf16 %v266, %v262
    %v642 = vpack.c.bf16 %v319, %v315
    %v643 = vpack.c.bf16 %v320, %v316
    %v644 = vpack.c.bf16 %v321, %v317
    %v645 = vpack.c.bf16 %v322, %v318
    %v646 = vpack.c.bf16 %v375, %v371
    %v647 = vpack.c.bf16 %v376, %v372
    %v648 = vpack.c.bf16 %v377, %v373
    %v649 = vpack.c.bf16 %v378, %v374
    %v650 = vpack.c.bf16 %v406, %v402
    %v651 = vpack.c.bf16 %v407, %v403
    %v652 = vpack.c.bf16 %v408, %v404
    %v653 = vpack.c.bf16 %v409, %v405
    %v654 = vpack.c.bf16 %v462, %v458
    %v655 = vpack.c.bf16 %v463, %v459
    %v656 = vpack.c.bf16 %v464, %v460
    %v657 = vpack.c.bf16 %v465, %v461
    %v658 = vpack.c.bf16 %v518, %v514
    %v659 = vpack.c.bf16 %v519, %v515
    %v660 = vpack.c.bf16 %v520, %v516
    %v661 = vpack.c.bf16 %v521, %v517
    %v662 = vpack.c.bf16 %v574, %v570
    %v663 = vpack.c.bf16 %v575, %v571
    %v664 = vpack.c.bf16 %v576, %v572
    %v665 = vpack.c.bf16 %v577, %v573
    %v666 = vpack.c.bf16 %v630, %v626
    %v667 = vpack.c.bf16 %v631, %v627
    %v668 = vpack.c.bf16 %v632, %v628
    %v669 = vpack.c.bf16 %v633, %v629
    %v670 = vld [vmem:[%s3] sm:$0xf]
    %v673 = vunpack.c.l.s4 1983009808
    %v674 = vunpack.c.0.s8 %v673
    %v675 = vlaneseq
    %v676 = vshrl.u32 %v675, 7
    %v677 = vsub.s32 %v674, %v676
    %v678 = vrot.slane %v670, %v677
    %v679 = vcombine.high %v678, %v678
    %vm681 = vcmask 130048
    %v683 = vsel %vm681, %v679, 0
    %685 = vmatprep.subr.bf16.mxu0 %v635
    %686 = vmatpush1.bf16.msra.mxu0 %v634
    %687 = vmatprep.subr.bf16.mxu0 %v639
    %688 = vmatpush1.bf16.msra.mxu0 %v638
    %689 = vmatprep.subr.bf16.mxu0 %v643
    %690 = vmatpush1.bf16.msra.mxu0 %v642
    %691 = vmatprep.subr.bf16.mxu0 %v647
    %692 = vmatpush1.bf16.msra.mxu0 %v646
    %693 = vmatprep.subr.bf16.mxu0 %v651
    %694 = vmatpush1.bf16.msra.mxu0 %v650
    %695 = vmatprep.subr.bf16.mxu0 %v655
    %696 = vmatpush1.bf16.msra.mxu0 %v654
    %697 = vmatprep.subr.bf16.mxu0 %v659
    %698 = vmatpush1.bf16.msra.mxu0 %v658
    %699 = vmatprep.subr.bf16.mxu0 %v663
    %700 = vmatpush1.bf16.msra.mxu0 %v662
    %701 = vmatprep.subr.bf16.mxu0 %v667
    %702 = vmatpush1.bf16.msra.mxu0 %v666
    %703 = vmatprep.subr.bf16.mxu0 0
    %704 = vmatpush1.bf16.msra.mxu0 0
    %705 = vmatprep.subr.bf16.mxu0 0
    %706 = vmatpush1.bf16.msra.mxu0 0
    %707 = vmatprep.subr.bf16.mxu0 0
    %708 = vmatpush1.bf16.msra.mxu0 0
    %709 = vmatprep.subr.bf16.mxu0 0
    %710 = vmatpush1.bf16.msra.mxu0 0
    %711 = vmatprep.subr.bf16.mxu0 0
    %712 = vmatpush1.bf16.msra.mxu0 0
    %713 = vmatprep.subr.bf16.mxu0 0
    %714 = vmatpush1.bf16.msra.mxu0 0
    %715 = vmatprep.subr.bf16.mxu0 0
    %716 = vmatpush1.bf16.msra.mxu0 0
    %717 = vmatprep.mubr.bf16.mxu0 %v683
    %718 = vmatmul.mubr.bf16.gmra.mrb[0].mxu0 %v678
    %v719 = vpop.f32.mrb[0].mxu0
    %v720 = vadd.f32 0.0, %v719
    %v721 = vpop.f32.mrb[0].mxu0
    %v722 = vadd.f32 0.0, %v721
    %v723 = vpop.f32.mrb[0].mxu0
    %v724 = vpop.f32.mrb[0].mxu0
    %725 = vdwg.mxu0
    %726 = vmatprep.subr.bf16.mxu0 %v637
    %727 = vmatpush1.bf16.msra.mxu0 %v636
    %728 = vmatprep.subr.bf16.mxu0 %v641
    %729 = vmatpush1.bf16.msra.mxu0 %v640
    %730 = vmatprep.subr.bf16.mxu0 %v645
    %731 = vmatpush1.bf16.msra.mxu0 %v644
    %732 = vmatprep.subr.bf16.mxu0 %v649
    %733 = vmatpush1.bf16.msra.mxu0 %v648
    %734 = vmatprep.subr.bf16.mxu0 %v653
    %735 = vmatpush1.bf16.msra.mxu0 %v652
    %736 = vmatprep.subr.bf16.mxu0 %v657
    %737 = vmatpush1.bf16.msra.mxu0 %v656
    %738 = vmatprep.subr.bf16.mxu0 %v661
    %739 = vmatpush1.bf16.msra.mxu0 %v660
    %740 = vmatprep.subr.bf16.mxu0 %v665
    %741 = vmatpush1.bf16.msra.mxu0 %v664
    %742 = vmatprep.subr.bf16.mxu0 %v669
    %743 = vmatpush1.bf16.msra.mxu0 %v668
    %744 = vmatprep.subr.bf16.mxu0 0
    %745 = vmatpush1.bf16.msra.mxu0 0
    %746 = vmatprep.subr.bf16.mxu0 0
    %747 = vmatpush1.bf16.msra.mxu0 0
    %748 = vmatprep.subr.bf16.mxu0 0
    %749 = vmatpush1.bf16.msra.mxu0 0
    %750 = vmatprep.subr.bf16.mxu0 0
    %751 = vmatpush1.bf16.msra.mxu0 0
    %752 = vmatprep.subr.bf16.mxu0 0
    %753 = vmatpush1.bf16.msra.mxu0 0
    %754 = vmatprep.subr.bf16.mxu0 0
    %755 = vmatpush1.bf16.msra.mxu0 0
    %756 = vmatprep.subr.bf16.mxu0 0
    %757 = vmatpush1.bf16.msra.mxu0 0
    %758 = vmatprep.mubr.bf16.mxu0 %v683
    %759 = vmatmul.mubr.bf16.gmra.mrb[0].mxu0 %v678
    %v760 = vpop.f32.mrb[0].mxu0
    %v761 = vadd.f32 0.0, %v760
    %v762 = vpop.f32.mrb[0].mxu0
    %v763 = vadd.f32 0.0, %v762
    %v764 = vpop.f32.mrb[0].mxu0
    %v765 = vpop.f32.mrb[0].mxu0
    %766 = vdwg.mxu0
    %v771 = vrot.slane %v720, 4
    %v772 = vrot.slane %v722, 4
    %v773 = vrot.slane %v761, 4
    %v774 = vrot.slane %v763, 4
    %779 = vst [vmem:[#allocation5] sm:$0xf0] %v771
    %780 = vst [vmem:[#allocation5 + $0x8] sm:$0xf0] %v772
    %781 = vst [vmem:[#allocation5 + $0x10] sm:$0xf0] %v773
    %782 = vst [vmem:[#allocation5 + $0x18] sm:$0xf0] %v774
    %v783 = vld [vmem:[#allocation5] sm:$0xff]
    %v784 = vld [vmem:[#allocation5 + $0x8] sm:$0xff]
    %v785 = vld [vmem:[#allocation5 + $0x10] sm:$0xff]
    %v786 = vld [vmem:[#allocation5 + $0x18] sm:$0xff]
    %v787 = vld [vmem:[#allocation5 + $0x20] sm:$0xff]
    %v788 = vld [vmem:[#allocation5 + $0x28] sm:$0xff]
    %v789 = vld [vmem:[#allocation5 + $0x30] sm:$0xff]
    %v790 = vld [vmem:[#allocation5 + $0x38] sm:$0xff]
    %v791 = vadd.f32 %v783, %v784
    %v792 = vadd.f32 %v791, %v785
    %v793 = vadd.f32 %v792, %v786
    %794 = vadd.xlane.f32.xlu0 %v793
    %v795 = vpop.xlane.xlu0 %794
    %v796 = vadd.f32 %v787, %v788
    %v797 = vadd.f32 %v796, %v789
    %v798 = vadd.f32 %v797, %v790
    %799 = vadd.xlane.f32.xlu0 %v798
    %v800 = vpop.xlane.xlu0 %799
    %v801 = vmul.f32 %v783, %v783
    %v802 = vmul.f32 %v784, %v784
    %v803 = vmul.f32 %v785, %v785
    %v804 = vmul.f32 %v786, %v786
    %v805 = vmul.f32 %v787, %v787
    %v806 = vmul.f32 %v788, %v788
    %v807 = vmul.f32 %v789, %v789
    %v808 = vmul.f32 %v790, %v790
    %v809 = vadd.f32 %v801, %v802
    %v810 = vadd.f32 %v809, %v803
    %v811 = vadd.f32 %v810, %v804
    %812 = vadd.xlane.f32.xlu0 %v811
    %v813 = vpop.xlane.xlu0 %812
    %v814 = vadd.f32 %v805, %v806
    %v815 = vadd.f32 %v814, %v807
    %v816 = vadd.f32 %v815, %v808
    %817 = vadd.xlane.f32.xlu0 %v816
    %v818 = vpop.xlane.xlu0 %817
    %v819 = vmul.f32 %v795, 0.001953125
    %v820 = vmul.f32 %v800, 0.001953125
    %v821 = vmul.f32 %v813, 0.001953125
    %v822 = vmul.f32 %v818, 0.001953125
    %v823 = vmul.f32 %v819, %v819
    %v824 = vmul.f32 %v820, %v820
    %v825 = vsub.f32 %v821, %v823
    %v826 = vsub.f32 %v822, %v824
    %s827 = scalar_lea.vmem %s1, 16
    %v828 = vld [vmem:[%s827] sm:$0xff]
    %v829 = vld [vmem:[%s827 + $0x8] sm:$0xff]
    %v830 = vadd.f32 %v825, 1e-05
    %v831 = vadd.f32 %v826, 1e-05
    %v832 = vrsqrt.pop %v830
    %v833 = vrsqrt.pop %v831
    %v834 = vmul.f32 %v828, %v832
    %v835 = vmul.f32 %v829, %v833
    %s836 = scalar_lea.vmem %s2, 16
    %v837 = vld [vmem:[%s836] sm:$0xff]
    %v838 = vld [vmem:[%s836 + $0x8] sm:$0xff]
    %v839 = vmul.f32 %v819, %v834
    %v840 = vmul.f32 %v820, %v835
    %v841 = vsub.f32 %v837, %v839
    %v842 = vsub.f32 %v838, %v840
    %844 = vset.pattern.permute.xlu0 0
    %845 = vperm.xlu0 %844, %v834
    %v846 = vpop.permute.xlu0 %845
    %849 = vset.pattern.permute.xlu0 0
    %850 = vperm.xlu0 %849, %v835
    %v851 = vpop.permute.xlu0 %850
    %v853 = vmul.f32 %v783, %v846
    %v854 = vmul.f32 %v784, %v846
    %v855 = vmul.f32 %v785, %v846
    %v856 = vmul.f32 %v786, %v846
    %v857 = vmul.f32 %v787, %v851
    %v858 = vmul.f32 %v788, %v851
    %v859 = vmul.f32 %v789, %v851
    %v860 = vmul.f32 %v790, %v851
    %862 = vset.pattern.permute.xlu0 0
    %863 = vperm.xlu0 %862, %v841
    %v864 = vpop.permute.xlu0 %863
    %867 = vset.pattern.permute.xlu0 0
    %868 = vperm.xlu0 %867, %v842
    %v869 = vpop.permute.xlu0 %868
    %v871 = vadd.f32 %v853, %v864
    %v872 = vadd.f32 %v854, %v864
    %v873 = vadd.f32 %v855, %v864
    %v874 = vadd.f32 %v856, %v864
    %v875 = vadd.f32 %v857, %v869
    %v876 = vadd.f32 %v858, %v869
    %v877 = vadd.f32 %v859, %v869
    %v878 = vadd.f32 %v860, %v869
    %v879 = vmax.f32 %v871, 0.0
    %v880 = vmax.f32 %v872, 0.0
    %v881 = vmax.f32 %v873, 0.0
    %v882 = vmax.f32 %v874, 0.0
    %v883 = vmax.f32 %v875, 0.0
    %v884 = vmax.f32 %v876, 0.0
    %v885 = vmax.f32 %v877, 0.0
    %v886 = vmax.f32 %v878, 0.0
    %887 = vrot.lane.b32.xlu0 %v879, 17
    %v888 = vpop.permute.xlu0 %887
    %889 = vrot.lane.b32.xlu0 %v883, 17
    %v890 = vpop.permute.xlu0 %889
    %891 = vrot.lane.b32.xlu0 %v880, 17
    %v892 = vpop.permute.xlu0 %891
    %893 = vrot.lane.b32.xlu0 %v884, 17
    %v894 = vpop.permute.xlu0 %893
    %895 = vrot.lane.b32.xlu0 %v881, 17
    %v896 = vpop.permute.xlu0 %895
    %897 = vrot.lane.b32.xlu0 %v885, 17
    %v898 = vpop.permute.xlu0 %897
    %899 = vrot.lane.b32.xlu0 %v882, 17
    %v900 = vpop.permute.xlu0 %899
    %901 = vrot.lane.b32.xlu0 %v886, 17
    %v902 = vpop.permute.xlu0 %901
    %v903 = vsel %vm172, %v896, %v900
    %v904 = vsel %vm172, %v898, %v902
    %v905 = vsel %vm172, %v892, %v896
    %v906 = vsel %vm172, %v894, %v898
    %v907 = vsel %vm172, %v888, %v892
    %v908 = vsel %vm172, %v890, %v894
    %v909 = vsel %vm172, %v900, %v888
    %v910 = vsel %vm172, %v902, %v890
    %v911 = vld [vmem:[#allocation2] ss:$8 sm:$0xf]
    %v913 = vlaneseq
    %v914 = vshrl.u32 %v913, 7
    %v915 = vsub.s32 0, %v914
    %v916 = vrot.slane %v911, %v915
    %v917 = vlaneseq
    %v918 = vshrl.u32 %v917, 7
    %v919 = vsub.s32 1, %v918
    %v920 = vrot.slane %v911, %v919
    %v921 = vlaneseq
    %v922 = vshrl.u32 %v921, 7
    %v923 = vsub.s32 2, %v922
    %v924 = vrot.slane %v911, %v923
    %v925 = vlaneseq
    %v926 = vshrl.u32 %v925, 7
    %v927 = vsub.s32 3, %v926
    %v928 = vrot.slane %v911, %v927
    %v933 = vmul.f32 %v909, %v916
    %v934 = vmul.f32 %v907, %v920
    %v935 = vmul.f32 %v905, %v924
    %v936 = vmul.f32 %v903, %v928
    %v937 = vmul.f32 %v910, %v916
    %v938 = vmul.f32 %v908, %v920
    %v939 = vmul.f32 %v906, %v924
    %v940 = vmul.f32 %v904, %v928
    %941 = vrot.lane.b32.xlu0 %v879, 16
    %v942 = vpop.permute.xlu0 %941
    %943 = vrot.lane.b32.xlu0 %v883, 16
    %v944 = vpop.permute.xlu0 %943
    %945 = vrot.lane.b32.xlu0 %v880, 16
    %v946 = vpop.permute.xlu0 %945
    %947 = vrot.lane.b32.xlu0 %v884, 16
    %v948 = vpop.permute.xlu0 %947
    %949 = vrot.lane.b32.xlu0 %v881, 16
    %v950 = vpop.permute.xlu0 %949
    %951 = vrot.lane.b32.xlu0 %v885, 16
    %v952 = vpop.permute.xlu0 %951
    %953 = vrot.lane.b32.xlu0 %v882, 16
    %v954 = vpop.permute.xlu0 %953
    %955 = vrot.lane.b32.xlu0 %v886, 16
    %v956 = vpop.permute.xlu0 %955
    %v957 = vsel %vm227, %v950, %v954
    %v958 = vsel %vm227, %v952, %v956
    %v959 = vsel %vm227, %v946, %v950
    %v960 = vsel %vm227, %v948, %v952
    %v961 = vsel %vm227, %v942, %v946
    %v962 = vsel %vm227, %v944, %v948
    %v963 = vsel %vm227, %v954, %v942
    %v964 = vsel %vm227, %v956, %v944
    %v965 = vld [vmem:[%s236] ss:$8 sm:$0xf]
    %v967 = vlaneseq
    %v968 = vshrl.u32 %v967, 7
    %v969 = vsub.s32 0, %v968
    %v970 = vrot.slane %v965, %v969
    %v971 = vlaneseq
    %v972 = vshrl.u32 %v971, 7
    %v973 = vsub.s32 1, %v972
    %v974 = vrot.slane %v965, %v973
    %v975 = vlaneseq
    %v976 = vshrl.u32 %v975, 7
    %v977 = vsub.s32 2, %v976
    %v978 = vrot.slane %v965, %v977
    %v979 = vlaneseq
    %v980 = vshrl.u32 %v979, 7
    %v981 = vsub.s32 3, %v980
    %v982 = vrot.slane %v965, %v981
    %v987 = vmul.f32 %v963, %v970
    %v988 = vmul.f32 %v961, %v974
    %v989 = vmul.f32 %v959, %v978
    %v990 = vmul.f32 %v957, %v982
    %v991 = vmul.f32 %v964, %v970
    %v992 = vmul.f32 %v962, %v974
    %v993 = vmul.f32 %v960, %v978
    %v994 = vmul.f32 %v958, %v982
    %995 = vrot.lane.b32.xlu0 %v879, 15
    %v996 = vpop.permute.xlu0 %995
    %997 = vrot.lane.b32.xlu0 %v883, 15
    %v998 = vpop.permute.xlu0 %997
    %999 = vrot.lane.b32.xlu0 %v880, 15
    %v1000 = vpop.permute.xlu0 %999
    %1001 = vrot.lane.b32.xlu0 %v884, 15
    %v1002 = vpop.permute.xlu0 %1001
    %1003 = vrot.lane.b32.xlu0 %v881, 15
    %v1004 = vpop.permute.xlu0 %1003
    %1005 = vrot.lane.b32.xlu0 %v885, 15
    %v1006 = vpop.permute.xlu0 %1005
    %1007 = vrot.lane.b32.xlu0 %v882, 15
    %v1008 = vpop.permute.xlu0 %1007
    %1009 = vrot.lane.b32.xlu0 %v886, 15
    %v1010 = vpop.permute.xlu0 %1009
    %v1011 = vsel %vm283, %v1004, %v1008
    %v1012 = vsel %vm283, %v1006, %v1010
    %v1013 = vsel %vm283, %v1000, %v1004
    %v1014 = vsel %vm283, %v1002, %v1006
    %v1015 = vsel %vm283, %v996, %v1000
    %v1016 = vsel %vm283, %v998, %v1002
    %v1017 = vsel %vm283, %v1008, %v996
    %v1018 = vsel %vm283, %v1010, %v998
    %v1019 = vld [vmem:[%s292] ss:$8 sm:$0xf]
    %v1021 = vlaneseq
    %v1022 = vshrl.u32 %v1021, 7
    %v1023 = vsub.s32 0, %v1022
    %v1024 = vrot.slane %v1019, %v1023
    %v1025 = vlaneseq
    %v1026 = vshrl.u32 %v1025, 7
    %v1027 = vsub.s32 1, %v1026
    %v1028 = vrot.slane %v1019, %v1027
    %v1029 = vlaneseq
    %v1030 = vshrl.u32 %v1029, 7
    %v1031 = vsub.s32 2, %v1030
    %v1032 = vrot.slane %v1019, %v1031
    %v1033 = vlaneseq
    %v1034 = vshrl.u32 %v1033, 7
    %v1035 = vsub.s32 3, %v1034
    %v1036 = vrot.slane %v1019, %v1035
    %v1041 = vmul.f32 %v1017, %v1024
    %v1042 = vmul.f32 %v1015, %v1028
    %v1043 = vmul.f32 %v1013, %v1032
    %v1044 = vmul.f32 %v1011, %v1036
    %v1045 = vmul.f32 %v1018, %v1024
    %v1046 = vmul.f32 %v1016, %v1028
    %v1047 = vmul.f32 %v1014, %v1032
    %v1048 = vmul.f32 %v1012, %v1036
    %1049 = vrot.lane.b32.xlu0 %v879, 1
    %v1050 = vpop.permute.xlu0 %1049
    %1051 = vrot.lane.b32.xlu0 %v883, 1
    %v1052 = vpop.permute.xlu0 %1051
    %1053 = vrot.lane.b32.xlu0 %v880, 1
    %v1054 = vpop.permute.xlu0 %1053
    %1055 = vrot.lane.b32.xlu0 %v884, 1
    %v1056 = vpop.permute.xlu0 %1055
    %1057 = vrot.lane.b32.xlu0 %v881, 1
    %v1058 = vpop.permute.xlu0 %1057
    %1059 = vrot.lane.b32.xlu0 %v885, 1
    %v1060 = vpop.permute.xlu0 %1059
    %1061 = vrot.lane.b32.xlu0 %v882, 1
    %v1062 = vpop.permute.xlu0 %1061
    %1063 = vrot.lane.b32.xlu0 %v886, 1
    %v1064 = vpop.permute.xlu0 %1063
    %v1065 = vsel %vm339, %v1058, %v1062
    %v1066 = vsel %vm339, %v1060, %v1064
    %v1067 = vsel %vm339, %v1054, %v1058
    %v1068 = vsel %vm339, %v1056, %v1060
    %v1069 = vsel %vm339, %v1050, %v1054
    %v1070 = vsel %vm339, %v1052, %v1056
    %v1071 = vsel %vm339, %v1062, %v1050
    %v1072 = vsel %vm339, %v1064, %v1052
    %v1073 = vld [vmem:[%s348] ss:$8 sm:$0xf]
    %v1075 = vlaneseq
    %v1076 = vshrl.u32 %v1075, 7
    %v1077 = vsub.s32 0, %v1076
    %v1078 = vrot.slane %v1073, %v1077
    %v1079 = vlaneseq
    %v1080 = vshrl.u32 %v1079, 7
    %v1081 = vsub.s32 1, %v1080
    %v1082 = vrot.slane %v1073, %v1081
    %v1083 = vlaneseq
    %v1084 = vshrl.u32 %v1083, 7
    %v1085 = vsub.s32 2, %v1084
    %v1086 = vrot.slane %v1073, %v1085
    %v1087 = vlaneseq
    %v1088 = vshrl.u32 %v1087, 7
    %v1089 = vsub.s32 3, %v1088
    %v1090 = vrot.slane %v1073, %v1089
    %v1095 = vmul.f32 %v1071, %v1078
    %v1096 = vmul.f32 %v1069, %v1082
    %v1097 = vmul.f32 %v1067, %v1086
    %v1098 = vmul.f32 %v1065, %v1090
    %v1099 = vmul.f32 %v1072, %v1078
    %v1100 = vmul.f32 %v1070, %v1082
    %v1101 = vmul.f32 %v1068, %v1086
    %v1102 = vmul.f32 %v1066, %v1090
    %v1103 = vld [vmem:[%s379] ss:$8 sm:$0xf]
    %v1105 = vlaneseq
    %v1106 = vshrl.u32 %v1105, 7
    %v1107 = vsub.s32 0, %v1106
    %v1108 = vrot.slane %v1103, %v1107
    %v1109 = vlaneseq
    %v1110 = vshrl.u32 %v1109, 7
    %v1111 = vsub.s32 1, %v1110
    %v1112 = vrot.slane %v1103, %v1111
    %v1113 = vlaneseq
    %v1114 = vshrl.u32 %v1113, 7
    %v1115 = vsub.s32 2, %v1114
    %v1116 = vrot.slane %v1103, %v1115
    %v1117 = vlaneseq
    %v1118 = vshrl.u32 %v1117, 7
    %v1119 = vsub.s32 3, %v1118
    %v1120 = vrot.slane %v1103, %v1119
    %v1125 = vmul.f32 %v879, %v1108
    %v1126 = vmul.f32 %v880, %v1112
    %v1127 = vmul.f32 %v881, %v1116
    %v1128 = vmul.f32 %v882, %v1120
    %v1129 = vmul.f32 %v883, %v1108
    %v1130 = vmul.f32 %v884, %v1112
    %v1131 = vmul.f32 %v885, %v1116
    %v1132 = vmul.f32 %v886, %v1120
    %1133 = vrot.lane.b32.xlu0 %v879, 127
    %v1134 = vpop.permute.xlu0 %1133
    %1135 = vrot.lane.b32.xlu0 %v883, 127
    %v1136 = vpop.permute.xlu0 %1135
    %1137 = vrot.lane.b32.xlu0 %v880, 127
    %v1138 = vpop.permute.xlu0 %1137
    %1139 = vrot.lane.b32.xlu0 %v884, 127
    %v1140 = vpop.permute.xlu0 %1139
    %1141 = vrot.lane.b32.xlu0 %v881, 127
    %v1142 = vpop.permute.xlu0 %1141
    %1143 = vrot.lane.b32.xlu0 %v885, 127
    %v1144 = vpop.permute.xlu0 %1143
    %1145 = vrot.lane.b32.xlu0 %v882, 127
    %v1146 = vpop.permute.xlu0 %1145
    %1147 = vrot.lane.b32.xlu0 %v886, 127
    %v1148 = vpop.permute.xlu0 %1147
    %v1149 = vsel %vm426, %v1142, %v1146
    %v1150 = vsel %vm426, %v1144, %v1148
    %v1151 = vsel %vm426, %v1138, %v1142
    %v1152 = vsel %vm426, %v1140, %v1144
    %v1153 = vsel %vm426, %v1134, %v1138
    %v1154 = vsel %vm426, %v1136, %v1140
    %v1155 = vsel %vm426, %v1146, %v1134
    %v1156 = vsel %vm426, %v1148, %v1136
    %v1157 = vld [vmem:[%s435] ss:$8 sm:$0xf]
    %v1159 = vlaneseq
    %v1160 = vshrl.u32 %v1159, 7
    %v1161 = vsub.s32 0, %v1160
    %v1162 = vrot.slane %v1157, %v1161
    %v1163 = vlaneseq
    %v1164 = vshrl.u32 %v1163, 7
    %v1165 = vsub.s32 1, %v1164
    %v1166 = vrot.slane %v1157, %v1165
    %v1167 = vlaneseq
    %v1168 = vshrl.u32 %v1167, 7
    %v1169 = vsub.s32 2, %v1168
    %v1170 = vrot.slane %v1157, %v1169
    %v1171 = vlaneseq
    %v1172 = vshrl.u32 %v1171, 7
    %v1173 = vsub.s32 3, %v1172
    %v1174 = vrot.slane %v1157, %v1173
    %v1179 = vmul.f32 %v1153, %v1162
    %v1180 = vmul.f32 %v1151, %v1166
    %v1181 = vmul.f32 %v1149, %v1170
    %v1182 = vmul.f32 %v1155, %v1174
    %v1183 = vmul.f32 %v1154, %v1162
    %v1184 = vmul.f32 %v1152, %v1166
    %v1185 = vmul.f32 %v1150, %v1170
    %v1186 = vmul.f32 %v1156, %v1174
    %1187 = vrot.lane.b32.xlu0 %v879, 113
    %v1188 = vpop.permute.xlu0 %1187
    %1189 = vrot.lane.b32.xlu0 %v883, 113
    %v1190 = vpop.permute.xlu0 %1189
    %1191 = vrot.lane.b32.xlu0 %v880, 113
    %v1192 = vpop.permute.xlu0 %1191
    %1193 = vrot.lane.b32.xlu0 %v884, 113
    %v1194 = vpop.permute.xlu0 %1193
    %1195 = vrot.lane.b32.xlu0 %v881, 113
    %v1196 = vpop.permute.xlu0 %1195
    %1197 = vrot.lane.b32.xlu0 %v885, 113
    %v1198 = vpop.permute.xlu0 %1197
    %1199 = vrot.lane.b32.xlu0 %v882, 113
    %v1200 = vpop.permute.xlu0 %1199
    %1201 = vrot.lane.b32.xlu0 %v886, 113
    %v1202 = vpop.permute.xlu0 %1201
    %v1203 = vsel %vm482, %v1196, %v1200
    %v1204 = vsel %vm482, %v1198, %v1202
    %v1205 = vsel %vm482, %v1192, %v1196
    %v1206 = vsel %vm482, %v1194, %v1198
    %v1207 = vsel %vm482, %v1188, %v1192
    %v1208 = vsel %vm482, %v1190, %v1194
    %v1209 = vsel %vm482, %v1200, %v1188
    %v1210 = vsel %vm482, %v1202, %v1190
    %v1211 = vld [vmem:[%s491] ss:$8 sm:$0xf]
    %v1213 = vlaneseq
    %v1214 = vshrl.u32 %v1213, 7
    %v1215 = vsub.s32 0, %v1214
    %v1216 = vrot.slane %v1211, %v1215
    %v1217 = vlaneseq
    %v1218 = vshrl.u32 %v1217, 7
    %v1219 = vsub.s32 1, %v1218
    %v1220 = vrot.slane %v1211, %v1219
    %v1221 = vlaneseq
    %v1222 = vshrl.u32 %v1221, 7
    %v1223 = vsub.s32 2, %v1222
    %v1224 = vrot.slane %v1211, %v1223
    %v1225 = vlaneseq
    %v1226 = vshrl.u32 %v1225, 7
    %v1227 = vsub.s32 3, %v1226
    %v1228 = vrot.slane %v1211, %v1227
    %v1233 = vmul.f32 %v1207, %v1216
    %v1234 = vmul.f32 %v1205, %v1220
    %v1235 = vmul.f32 %v1203, %v1224
    %v1236 = vmul.f32 %v1209, %v1228
    %v1237 = vmul.f32 %v1208, %v1216
    %v1238 = vmul.f32 %v1206, %v1220
    %v1239 = vmul.f32 %v1204, %v1224
    %v1240 = vmul.f32 %v1210, %v1228
    %1241 = vrot.lane.b32.xlu0 %v879, 112
    %v1242 = vpop.permute.xlu0 %1241
    %1243 = vrot.lane.b32.xlu0 %v883, 112
    %v1244 = vpop.permute.xlu0 %1243
    %1245 = vrot.lane.b32.xlu0 %v880, 112
    %v1246 = vpop.permute.xlu0 %1245
    %1247 = vrot.lane.b32.xlu0 %v884, 112
    %v1248 = vpop.permute.xlu0 %1247
    %1249 = vrot.lane.b32.xlu0 %v881, 112
    %v1250 = vpop.permute.xlu0 %1249
    %1251 = vrot.lane.b32.xlu0 %v885, 112
    %v1252 = vpop.permute.xlu0 %1251
    %1253 = vrot.lane.b32.xlu0 %v882, 112
    %v1254 = vpop.permute.xlu0 %1253
    %1255 = vrot.lane.b32.xlu0 %v886, 112
    %v1256 = vpop.permute.xlu0 %1255
    %v1257 = vsel %vm538, %v1250, %v1254
    %v1258 = vsel %vm538, %v1252, %v1256
    %v1259 = vsel %vm538, %v1246, %v1250
    %v1260 = vsel %vm538, %v1248, %v1252
    %v1261 = vsel %vm538, %v1242, %v1246
    %v1262 = vsel %vm538, %v1244, %v1248
    %v1263 = vsel %vm538, %v1254, %v1242
    %v1264 = vsel %vm538, %v1256, %v1244
    %v1265 = vld [vmem:[%s547] ss:$8 sm:$0xf]
    %v1267 = vlaneseq
    %v1268 = vshrl.u32 %v1267, 7
    %v1269 = vsub.s32 0, %v1268
    %v1270 = vrot.slane %v1265, %v1269
    %v1271 = vlaneseq
    %v1272 = vshrl.u32 %v1271, 7
    %v1273 = vsub.s32 1, %v1272
    %v1274 = vrot.slane %v1265, %v1273
    %v1275 = vlaneseq
    %v1276 = vshrl.u32 %v1275, 7
    %v1277 = vsub.s32 2, %v1276
    %v1278 = vrot.slane %v1265, %v1277
    %v1279 = vlaneseq
    %v1280 = vshrl.u32 %v1279, 7
    %v1281 = vsub.s32 3, %v1280
    %v1282 = vrot.slane %v1265, %v1281
    %v1287 = vmul.f32 %v1261, %v1270
    %v1288 = vmul.f32 %v1259, %v1274
    %v1289 = vmul.f32 %v1257, %v1278
    %v1290 = vmul.f32 %v1263, %v1282
    %v1291 = vmul.f32 %v1262, %v1270
    %v1292 = vmul.f32 %v1260, %v1274
    %v1293 = vmul.f32 %v1258, %v1278
    %v1294 = vmul.f32 %v1264, %v1282
    %1295 = vrot.lane.b32.xlu0 %v879, 111
    %v1296 = vpop.permute.xlu0 %1295
    %1297 = vrot.lane.b32.xlu0 %v883, 111
    %v1298 = vpop.permute.xlu0 %1297
    %1299 = vrot.lane.b32.xlu0 %v880, 111
    %v1300 = vpop.permute.xlu0 %1299
    %1301 = vrot.lane.b32.xlu0 %v884, 111
    %v1302 = vpop.permute.xlu0 %1301
    %1303 = vrot.lane.b32.xlu0 %v881, 111
    %v1304 = vpop.permute.xlu0 %1303
    %1305 = vrot.lane.b32.xlu0 %v885, 111
    %v1306 = vpop.permute.xlu0 %1305
    %1307 = vrot.lane.b32.xlu0 %v882, 111
    %v1308 = vpop.permute.xlu0 %1307
    %1309 = vrot.lane.b32.xlu0 %v886, 111
    %v1310 = vpop.permute.xlu0 %1309
    %v1311 = vsel %vm594, %v1304, %v1308
    %v1312 = vsel %vm594, %v1306, %v1310
    %v1313 = vsel %vm594, %v1300, %v1304
    %v1314 = vsel %vm594, %v1302, %v1306
    %v1315 = vsel %vm594, %v1296, %v1300
    %v1316 = vsel %vm594, %v1298, %v1302
    %v1317 = vsel %vm594, %v1308, %v1296
    %v1318 = vsel %vm594, %v1310, %v1298
    %v1319 = vld [vmem:[%s603] ss:$8 sm:$0xf]
    %v1321 = vlaneseq
    %v1322 = vshrl.u32 %v1321, 7
    %v1323 = vsub.s32 0, %v1322
    %v1324 = vrot.slane %v1319, %v1323
    %v1325 = vlaneseq
    %v1326 = vshrl.u32 %v1325, 7
    %v1327 = vsub.s32 1, %v1326
    %v1328 = vrot.slane %v1319, %v1327
    %v1329 = vlaneseq
    %v1330 = vshrl.u32 %v1329, 7
    %v1331 = vsub.s32 2, %v1330
    %v1332 = vrot.slane %v1319, %v1331
    %v1333 = vlaneseq
    %v1334 = vshrl.u32 %v1333, 7
    %v1335 = vsub.s32 3, %v1334
    %v1336 = vrot.slane %v1319, %v1335
    %v1341 = vmul.f32 %v1315, %v1324
    %v1342 = vmul.f32 %v1313, %v1328
    %v1343 = vmul.f32 %v1311, %v1332
    %v1344 = vmul.f32 %v1317, %v1336
    %v1345 = vmul.f32 %v1316, %v1324
    %v1346 = vmul.f32 %v1314, %v1328
    %v1347 = vmul.f32 %v1312, %v1332
    %v1348 = vmul.f32 %v1318, %v1336
    %v1349 = vpack.c.bf16 %v937, %v933
    %v1350 = vpack.c.bf16 %v938, %v934
    %v1351 = vpack.c.bf16 %v939, %v935
    %v1352 = vpack.c.bf16 %v940, %v936
    %v1353 = vpack.c.bf16 %v991, %v987
    %v1354 = vpack.c.bf16 %v992, %v988
    %v1355 = vpack.c.bf16 %v993, %v989
    %v1356 = vpack.c.bf16 %v994, %v990
    %v1357 = vpack.c.bf16 %v1045, %v1041
    %v1358 = vpack.c.bf16 %v1046, %v1042
    %v1359 = vpack.c.bf16 %v1047, %v1043
    %v1360 = vpack.c.bf16 %v1048, %v1044
    %v1361 = vpack.c.bf16 %v1099, %v1095
    %v1362 = vpack.c.bf16 %v1100, %v1096
    %v1363 = vpack.c.bf16 %v1101, %v1097
    %v1364 = vpack.c.bf16 %v1102, %v1098
    %v1365 = vpack.c.bf16 %v1129, %v1125
    %v1366 = vpack.c.bf16 %v1130, %v1126
    %v1367 = vpack.c.bf16 %v1131, %v1127
    %v1368 = vpack.c.bf16 %v1132, %v1128
    %v1369 = vpack.c.bf16 %v1183, %v1179
    %v1370 = vpack.c.bf16 %v1184, %v1180
    %v1371 = vpack.c.bf16 %v1185, %v1181
    %v1372 = vpack.c.bf16 %v1186, %v1182
    %v1373 = vpack.c.bf16 %v1237, %v1233
    %v1374 = vpack.c.bf16 %v1238, %v1234
    %v1375 = vpack.c.bf16 %v1239, %v1235
    %v1376 = vpack.c.bf16 %v1240, %v1236
    %v1377 = vpack.c.bf16 %v1291, %v1287
    %v1378 = vpack.c.bf16 %v1292, %v1288
    %v1379 = vpack.c.bf16 %v1293, %v1289
    %v1380 = vpack.c.bf16 %v1294, %v1290
    %v1381 = vpack.c.bf16 %v1345, %v1341
    %v1382 = vpack.c.bf16 %v1346, %v1342
    %v1383 = vpack.c.bf16 %v1347, %v1343
    %v1384 = vpack.c.bf16 %v1348, %v1344
    %s1385 = scalar_lea.vmem %s3, 4
    %v1386 = vld [vmem:[%s1385] sm:$0xf]
    %v1389 = vunpack.c.l.s4 1983009808
    %v1390 = vunpack.c.0.s8 %v1389
    %v1391 = vlaneseq
    %v1392 = vshrl.u32 %v1391, 7
    %v1393 = vsub.s32 %v1390, %v1392
    %v1394 = vrot.slane %v1386, %v1393
    %v1395 = vcombine.high %v1394, %v1394
    %v1398 = vsel %vm681, %v1395, 0
    %1400 = vmatprep.subr.bf16.mxu0 %v1350
    %1401 = vmatpush1.bf16.msra.mxu0 %v1349
    %1402 = vmatprep.subr.bf16.mxu0 %v1354
    %1403 = vmatpush1.bf16.msra.mxu0 %v1353
    %1404 = vmatprep.subr.bf16.mxu0 %v1358
    %1405 = vmatpush1.bf16.msra.mxu0 %v1357
    %1406 = vmatprep.subr.bf16.mxu0 %v1362
    %1407 = vmatpush1.bf16.msra.mxu0 %v1361
    %1408 = vmatprep.subr.bf16.mxu0 %v1366
    %1409 = vmatpush1.bf16.msra.mxu0 %v1365
    %1410 = vmatprep.subr.bf16.mxu0 %v1370
    %1411 = vmatpush1.bf16.msra.mxu0 %v1369
    %1412 = vmatprep.subr.bf16.mxu0 %v1374
    %1413 = vmatpush1.bf16.msra.mxu0 %v1373
    %1414 = vmatprep.subr.bf16.mxu0 %v1378
    %1415 = vmatpush1.bf16.msra.mxu0 %v1377
    %1416 = vmatprep.subr.bf16.mxu0 %v1382
    %1417 = vmatpush1.bf16.msra.mxu0 %v1381
    %1418 = vmatprep.subr.bf16.mxu0 0
    %1419 = vmatpush1.bf16.msra.mxu0 0
    %1420 = vmatprep.subr.bf16.mxu0 0
    %1421 = vmatpush1.bf16.msra.mxu0 0
    %1422 = vmatprep.subr.bf16.mxu0 0
    %1423 = vmatpush1.bf16.msra.mxu0 0
    %1424 = vmatprep.subr.bf16.mxu0 0
    %1425 = vmatpush1.bf16.msra.mxu0 0
    %1426 = vmatprep.subr.bf16.mxu0 0
    %1427 = vmatpush1.bf16.msra.mxu0 0
    %1428 = vmatprep.subr.bf16.mxu0 0
    %1429 = vmatpush1.bf16.msra.mxu0 0
    %1430 = vmatprep.subr.bf16.mxu0 0
    %1431 = vmatpush1.bf16.msra.mxu0 0
    %1432 = vmatprep.mubr.bf16.mxu0 %v1398
    %1433 = vmatmul.mubr.bf16.gmra.mrb[0].mxu0 %v1394
    %v1434 = vpop.f32.mrb[0].mxu0
    %v1435 = vadd.f32 0.0, %v1434
    %v1436 = vpop.f32.mrb[0].mxu0
    %v1437 = vadd.f32 0.0, %v1436
    %v1438 = vpop.f32.mrb[0].mxu0
    %v1439 = vpop.f32.mrb[0].mxu0
    %1440 = vdwg.mxu0
    %1441 = vmatprep.subr.bf16.mxu0 %v1352
    %1442 = vmatpush1.bf16.msra.mxu0 %v1351
    %1443 = vmatprep.subr.bf16.mxu0 %v1356
    %1444 = vmatpush1.bf16.msra.mxu0 %v1355
    %1445 = vmatprep.subr.bf16.mxu0 %v1360
    %1446 = vmatpush1.bf16.msra.mxu0 %v1359
    %1447 = vmatprep.subr.bf16.mxu0 %v1364
    %1448 = vmatpush1.bf16.msra.mxu0 %v1363
    %1449 = vmatprep.subr.bf16.mxu0 %v1368
    %1450 = vmatpush1.bf16.msra.mxu0 %v1367
    %1451 = vmatprep.subr.bf16.mxu0 %v1372
    %1452 = vmatpush1.bf16.msra.mxu0 %v1371
    %1453 = vmatprep.subr.bf16.mxu0 %v1376
    %1454 = vmatpush1.bf16.msra.mxu0 %v1375
    %1455 = vmatprep.subr.bf16.mxu0 %v1380
    %1456 = vmatpush1.bf16.msra.mxu0 %v1379
    %1457 = vmatprep.subr.bf16.mxu0 %v1384
    %1458 = vmatpush1.bf16.msra.mxu0 %v1383
    %1459 = vmatprep.subr.bf16.mxu0 0
    %1460 = vmatpush1.bf16.msra.mxu0 0
    %1461 = vmatprep.subr.bf16.mxu0 0
    %1462 = vmatpush1.bf16.msra.mxu0 0
    %1463 = vmatprep.subr.bf16.mxu0 0
    %1464 = vmatpush1.bf16.msra.mxu0 0
    %1465 = vmatprep.subr.bf16.mxu0 0
    %1466 = vmatpush1.bf16.msra.mxu0 0
    %1467 = vmatprep.subr.bf16.mxu0 0
    %1468 = vmatpush1.bf16.msra.mxu0 0
    %1469 = vmatprep.subr.bf16.mxu0 0
    %1470 = vmatpush1.bf16.msra.mxu0 0
    %1471 = vmatprep.subr.bf16.mxu0 0
    %1472 = vmatpush1.bf16.msra.mxu0 0
    %1473 = vmatprep.mubr.bf16.mxu0 %v1398
    %1474 = vmatmul.mubr.bf16.gmra.mrb[0].mxu0 %v1394
    %v1475 = vpop.f32.mrb[0].mxu0
    %v1476 = vadd.f32 0.0, %v1475
    %v1477 = vpop.f32.mrb[0].mxu0
    %v1478 = vadd.f32 0.0, %v1477
    %v1479 = vpop.f32.mrb[0].mxu0
    %v1480 = vpop.f32.mrb[0].mxu0
    %1481 = vdwg.mxu0
    %1482 = vst [vmem:[#allocation5 + $0x20] sm:$0xf] %v1435
    %1483 = vst [vmem:[#allocation5 + $0x28] sm:$0xf] %v1437
    %1484 = vst [vmem:[#allocation5 + $0x30] sm:$0xf] %v1476
    %1485 = vst [vmem:[#allocation5 + $0x38] sm:$0xf] %v1478
    %v1486 = vld [vmem:[#allocation5] sm:$0xff]
    %v1487 = vld [vmem:[#allocation5 + $0x8] sm:$0xff]
    %v1488 = vld [vmem:[#allocation5 + $0x10] sm:$0xff]
    %v1489 = vld [vmem:[#allocation5 + $0x18] sm:$0xff]
    %v1490 = vld [vmem:[#allocation5 + $0x20] sm:$0xff]
    %v1491 = vld [vmem:[#allocation5 + $0x28] sm:$0xff]
    %v1492 = vld [vmem:[#allocation5 + $0x30] sm:$0xff]
    %v1493 = vld [vmem:[#allocation5 + $0x38] sm:$0xff]
    %v1494 = vadd.f32 %v1486, %v1487
    %v1495 = vadd.f32 %v1494, %v1488
    %v1496 = vadd.f32 %v1495, %v1489
    %1497 = vadd.xlane.f32.xlu0 %v1496
    %v1498 = vpop.xlane.xlu0 %1497
    %v1499 = vadd.f32 %v1490, %v1491
    %v1500 = vadd.f32 %v1499, %v1492
    %v1501 = vadd.f32 %v1500, %v1493
    %1502 = vadd.xlane.f32.xlu0 %v1501
    %v1503 = vpop.xlane.xlu0 %1502
    %v1504 = vmul.f32 %v1486, %v1486
    %v1505 = vmul.f32 %v1487, %v1487
    %v1506 = vmul.f32 %v1488, %v1488
    %v1507 = vmul.f32 %v1489, %v1489
    %v1508 = vmul.f32 %v1490, %v1490
    %v1509 = vmul.f32 %v1491, %v1491
    %v1510 = vmul.f32 %v1492, %v1492
    %v1511 = vmul.f32 %v1493, %v1493
    %v1512 = vadd.f32 %v1504, %v1505
    %v1513 = vadd.f32 %v1512, %v1506
    %v1514 = vadd.f32 %v1513, %v1507
    %1515 = vadd.xlane.f32.xlu0 %v1514
    %v1516 = vpop.xlane.xlu0 %1515
    %v1517 = vadd.f32 %v1508, %v1509
    %v1518 = vadd.f32 %v1517, %v1510
    %v1519 = vadd.f32 %v1518, %v1511
    %1520 = vadd.xlane.f32.xlu0 %v1519
    %v1521 = vpop.xlane.xlu0 %1520
    %v1522 = vmul.f32 %v1498, 0.001953125
    %v1523 = vmul.f32 %v1503, 0.001953125
    %v1524 = vmul.f32 %v1516, 0.001953125
    %v1525 = vmul.f32 %v1521, 0.001953125
    %v1526 = vmul.f32 %v1522, %v1522
    %v1527 = vmul.f32 %v1523, %v1523
    %v1528 = vsub.f32 %v1524, %v1526
    %v1529 = vsub.f32 %v1525, %v1527
    %s1530 = scalar_lea.vmem %s1, 32
    %v1531 = vld [vmem:[%s1530] sm:$0xff]
    %v1532 = vld [vmem:[%s1530 + $0x8] sm:$0xff]
    %v1533 = vadd.f32 %v1528, 1e-05
    %v1534 = vadd.f32 %v1529, 1e-05
    %v1535 = vrsqrt.pop %v1533
    %v1536 = vrsqrt.pop %v1534
    %v1537 = vmul.f32 %v1531, %v1535
    %v1538 = vmul.f32 %v1532, %v1536
    %s1539 = scalar_lea.vmem %s2, 32
    %v1540 = vld [vmem:[%s1539] sm:$0xff]
    %v1541 = vld [vmem:[%s1539 + $0x8] sm:$0xff]
    %v1542 = vmul.f32 %v1522, %v1537
    %v1543 = vmul.f32 %v1523, %v1538
    %v1544 = vsub.f32 %v1540, %v1542
    %v1545 = vsub.f32 %v1541, %v1543
    %1547 = vset.pattern.permute.xlu0 0
    %1548 = vperm.xlu0 %1547, %v1537
    %v1549 = vpop.permute.xlu0 %1548
    %1552 = vset.pattern.permute.xlu0 0
    %1553 = vperm.xlu0 %1552, %v1538
    %v1554 = vpop.permute.xlu0 %1553
    %v1556 = vmul.f32 %v1486, %v1549
    %v1557 = vmul.f32 %v1487, %v1549
    %v1558 = vmul.f32 %v1488, %v1549
    %v1559 = vmul.f32 %v1489, %v1549
    %v1560 = vmul.f32 %v1490, %v1554
    %v1561 = vmul.f32 %v1491, %v1554
    %v1562 = vmul.f32 %v1492, %v1554
    %v1563 = vmul.f32 %v1493, %v1554
    %1565 = vset.pattern.permute.xlu0 0
    %1566 = vperm.xlu0 %1565, %v1544
    %v1567 = vpop.permute.xlu0 %1566
    %1570 = vset.pattern.permute.xlu0 0
    %1571 = vperm.xlu0 %1570, %v1545
    %v1572 = vpop.permute.xlu0 %1571
    %v1574 = vadd.f32 %v1556, %v1567
    %v1575 = vadd.f32 %v1557, %v1567
    %v1576 = vadd.f32 %v1558, %v1567
    %v1577 = vadd.f32 %v1559, %v1567
    %v1578 = vadd.f32 %v1560, %v1572
    %v1579 = vadd.f32 %v1561, %v1572
    %v1580 = vadd.f32 %v1562, %v1572
    %v1581 = vadd.f32 %v1563, %v1572
    %v1582 = vmax.f32 %v1574, 0.0
    %v1583 = vmax.f32 %v1575, 0.0
    %v1584 = vmax.f32 %v1576, 0.0
    %v1585 = vmax.f32 %v1577, 0.0
    %v1586 = vmax.f32 %v1578, 0.0
    %v1587 = vmax.f32 %v1579, 0.0
    %v1588 = vmax.f32 %v1580, 0.0
    %v1589 = vmax.f32 %v1581, 0.0
    %1590 = vrot.lane.b32.xlu0 %v1582, 17
    %v1591 = vpop.permute.xlu0 %1590
    %1592 = vrot.lane.b32.xlu0 %v1586, 17
    %v1593 = vpop.permute.xlu0 %1592
    %1594 = vrot.lane.b32.xlu0 %v1583, 17
    %v1595 = vpop.permute.xlu0 %1594
    %1596 = vrot.lane.b32.xlu0 %v1587, 17
    %v1597 = vpop.permute.xlu0 %1596
    %1598 = vrot.lane.b32.xlu0 %v1584, 17
    %v1599 = vpop.permute.xlu0 %1598
    %1600 = vrot.lane.b32.xlu0 %v1588, 17
    %v1601 = vpop.permute.xlu0 %1600
    %1602 = vrot.lane.b32.xlu0 %v1585, 17
    %v1603 = vpop.permute.xlu0 %1602
    %1604 = vrot.lane.b32.xlu0 %v1589, 17
    %v1605 = vpop.permute.xlu0 %1604
    %v1606 = vsel %vm172, %v1599, %v1603
    %v1607 = vsel %vm172, %v1601, %v1605
    %v1608 = vsel %vm172, %v1595, %v1599
    %v1609 = vsel %vm172, %v1597, %v1601
    %v1610 = vsel %vm172, %v1591, %v1595
    %v1611 = vsel %vm172, %v1593, %v1597
    %v1612 = vsel %vm172, %v1603, %v1591
    %v1613 = vsel %vm172, %v1605, %v1593
    %v1614 = vld [vmem:[#allocation2] ss:$8 sm:$0xf]
    %v1616 = vlaneseq
    %v1617 = vshrl.u32 %v1616, 7
    %v1618 = vsub.s32 0, %v1617
    %v1619 = vrot.slane %v1614, %v1618
    %v1620 = vlaneseq
    %v1621 = vshrl.u32 %v1620, 7
    %v1622 = vsub.s32 1, %v1621
    %v1623 = vrot.slane %v1614, %v1622
    %v1624 = vlaneseq
    %v1625 = vshrl.u32 %v1624, 7
    %v1626 = vsub.s32 2, %v1625
    %v1627 = vrot.slane %v1614, %v1626
    %v1628 = vlaneseq
    %v1629 = vshrl.u32 %v1628, 7
    %v1630 = vsub.s32 3, %v1629
    %v1631 = vrot.slane %v1614, %v1630
    %v1636 = vmul.f32 %v1612, %v1619
    %v1637 = vmul.f32 %v1610, %v1623
    %v1638 = vmul.f32 %v1608, %v1627
    %v1639 = vmul.f32 %v1606, %v1631
    %v1640 = vmul.f32 %v1613, %v1619
    %v1641 = vmul.f32 %v1611, %v1623
    %v1642 = vmul.f32 %v1609, %v1627
    %v1643 = vmul.f32 %v1607, %v1631
    %1644 = vrot.lane.b32.xlu0 %v1582, 16
    %v1645 = vpop.permute.xlu0 %1644
    %1646 = vrot.lane.b32.xlu0 %v1586, 16
    %v1647 = vpop.permute.xlu0 %1646
    %1648 = vrot.lane.b32.xlu0 %v1583, 16
    %v1649 = vpop.permute.xlu0 %1648
    %1650 = vrot.lane.b32.xlu0 %v1587, 16
    %v1651 = vpop.permute.xlu0 %1650
    %1652 = vrot.lane.b32.xlu0 %v1584, 16
    %v1653 = vpop.permute.xlu0 %1652
    %1654 = vrot.lane.b32.xlu0 %v1588, 16
    %v1655 = vpop.permute.xlu0 %1654
    %1656 = vrot.lane.b32.xlu0 %v1585, 16
    %v1657 = vpop.permute.xlu0 %1656
    %1658 = vrot.lane.b32.xlu0 %v1589, 16
    %v1659 = vpop.permute.xlu0 %1658
    %v1660 = vsel %vm227, %v1653, %v1657
    %v1661 = vsel %vm227, %v1655, %v1659
    %v1662 = vsel %vm227, %v1649, %v1653
    %v1663 = vsel %vm227, %v1651, %v1655
    %v1664 = vsel %vm227, %v1645, %v1649
    %v1665 = vsel %vm227, %v1647, %v1651
    %v1666 = vsel %vm227, %v1657, %v1645
    %v1667 = vsel %vm227, %v1659, %v1647
    %v1668 = vld [vmem:[%s236] ss:$8 sm:$0xf]
    %v1670 = vlaneseq
    %v1671 = vshrl.u32 %v1670, 7
    %v1672 = vsub.s32 0, %v1671
    %v1673 = vrot.slane %v1668, %v1672
    %v1674 = vlaneseq
    %v1675 = vshrl.u32 %v1674, 7
    %v1676 = vsub.s32 1, %v1675
    %v1677 = vrot.slane %v1668, %v1676
    %v1678 = vlaneseq
    %v1679 = vshrl.u32 %v1678, 7
    %v1680 = vsub.s32 2, %v1679
    %v1681 = vrot.slane %v1668, %v1680
    %v1682 = vlaneseq
    %v1683 = vshrl.u32 %v1682, 7
    %v1684 = vsub.s32 3, %v1683
    %v1685 = vrot.slane %v1668, %v1684
    %v1690 = vmul.f32 %v1666, %v1673
    %v1691 = vmul.f32 %v1664, %v1677
    %v1692 = vmul.f32 %v1662, %v1681
    %v1693 = vmul.f32 %v1660, %v1685
    %v1694 = vmul.f32 %v1667, %v1673
    %v1695 = vmul.f32 %v1665, %v1677
    %v1696 = vmul.f32 %v1663, %v1681
    %v1697 = vmul.f32 %v1661, %v1685
    %1698 = vrot.lane.b32.xlu0 %v1582, 15
    %v1699 = vpop.permute.xlu0 %1698
    %1700 = vrot.lane.b32.xlu0 %v1586, 15
    %v1701 = vpop.permute.xlu0 %1700
    %1702 = vrot.lane.b32.xlu0 %v1583, 15
    %v1703 = vpop.permute.xlu0 %1702
    %1704 = vrot.lane.b32.xlu0 %v1587, 15
    %v1705 = vpop.permute.xlu0 %1704
    %1706 = vrot.lane.b32.xlu0 %v1584, 15
    %v1707 = vpop.permute.xlu0 %1706
    %1708 = vrot.lane.b32.xlu0 %v1588, 15
    %v1709 = vpop.permute.xlu0 %1708
    %1710 = vrot.lane.b32.xlu0 %v1585, 15
    %v1711 = vpop.permute.xlu0 %1710
    %1712 = vrot.lane.b32.xlu0 %v1589, 15
    %v1713 = vpop.permute.xlu0 %1712
    %v1714 = vsel %vm283, %v1707, %v1711
    %v1715 = vsel %vm283, %v1709, %v1713
    %v1716 = vsel %vm283, %v1703, %v1707
    %v1717 = vsel %vm283, %v1705, %v1709
    %v1718 = vsel %vm283, %v1699, %v1703
    %v1719 = vsel %vm283, %v1701, %v1705
    %v1720 = vsel %vm283, %v1711, %v1699
    %v1721 = vsel %vm283, %v1713, %v1701
    %v1722 = vld [vmem:[%s292] ss:$8 sm:$0xf]
    %v1724 = vlaneseq
    %v1725 = vshrl.u32 %v1724, 7
    %v1726 = vsub.s32 0, %v1725
    %v1727 = vrot.slane %v1722, %v1726
    %v1728 = vlaneseq
    %v1729 = vshrl.u32 %v1728, 7
    %v1730 = vsub.s32 1, %v1729
    %v1731 = vrot.slane %v1722, %v1730
    %v1732 = vlaneseq
    %v1733 = vshrl.u32 %v1732, 7
    %v1734 = vsub.s32 2, %v1733
    %v1735 = vrot.slane %v1722, %v1734
    %v1736 = vlaneseq
    %v1737 = vshrl.u32 %v1736, 7
    %v1738 = vsub.s32 3, %v1737
    %v1739 = vrot.slane %v1722, %v1738
    %v1744 = vmul.f32 %v1720, %v1727
    %v1745 = vmul.f32 %v1718, %v1731
    %v1746 = vmul.f32 %v1716, %v1735
    %v1747 = vmul.f32 %v1714, %v1739
    %v1748 = vmul.f32 %v1721, %v1727
    %v1749 = vmul.f32 %v1719, %v1731
    %v1750 = vmul.f32 %v1717, %v1735
    %v1751 = vmul.f32 %v1715, %v1739
    %1752 = vrot.lane.b32.xlu0 %v1582, 1
    %v1753 = vpop.permute.xlu0 %1752
    %1754 = vrot.lane.b32.xlu0 %v1586, 1
    %v1755 = vpop.permute.xlu0 %1754
    %1756 = vrot.lane.b32.xlu0 %v1583, 1
    %v1757 = vpop.permute.xlu0 %1756
    %1758 = vrot.lane.b32.xlu0 %v1587, 1
    %v1759 = vpop.permute.xlu0 %1758
    %1760 = vrot.lane.b32.xlu0 %v1584, 1
    %v1761 = vpop.permute.xlu0 %1760
    %1762 = vrot.lane.b32.xlu0 %v1588, 1
    %v1763 = vpop.permute.xlu0 %1762
    %1764 = vrot.lane.b32.xlu0 %v1585, 1
    %v1765 = vpop.permute.xlu0 %1764
    %1766 = vrot.lane.b32.xlu0 %v1589, 1
    %v1767 = vpop.permute.xlu0 %1766
    %v1768 = vsel %vm339, %v1761, %v1765
    %v1769 = vsel %vm339, %v1763, %v1767
    %v1770 = vsel %vm339, %v1757, %v1761
    %v1771 = vsel %vm339, %v1759, %v1763
    %v1772 = vsel %vm339, %v1753, %v1757
    %v1773 = vsel %vm339, %v1755, %v1759
    %v1774 = vsel %vm339, %v1765, %v1753
    %v1775 = vsel %vm339, %v1767, %v1755
    %v1776 = vld [vmem:[%s348] ss:$8 sm:$0xf]
    %v1778 = vlaneseq
    %v1779 = vshrl.u32 %v1778, 7
    %v1780 = vsub.s32 0, %v1779
    %v1781 = vrot.slane %v1776, %v1780
    %v1782 = vlaneseq
    %v1783 = vshrl.u32 %v1782, 7
    %v1784 = vsub.s32 1, %v1783
    %v1785 = vrot.slane %v1776, %v1784
    %v1786 = vlaneseq
    %v1787 = vshrl.u32 %v1786, 7
    %v1788 = vsub.s32 2, %v1787
    %v1789 = vrot.slane %v1776, %v1788
    %v1790 = vlaneseq
    %v1791 = vshrl.u32 %v1790, 7
    %v1792 = vsub.s32 3, %v1791
    %v1793 = vrot.slane %v1776, %v1792
    %v1798 = vmul.f32 %v1774, %v1781
    %v1799 = vmul.f32 %v1772, %v1785
    %v1800 = vmul.f32 %v1770, %v1789
    %v1801 = vmul.f32 %v1768, %v1793
    %v1802 = vmul.f32 %v1775, %v1781
    %v1803 = vmul.f32 %v1773, %v1785
    %v1804 = vmul.f32 %v1771, %v1789
    %v1805 = vmul.f32 %v1769, %v1793
    %v1806 = vld [vmem:[%s379] ss:$8 sm:$0xf]
    %v1808 = vlaneseq
    %v1809 = vshrl.u32 %v1808, 7
    %v1810 = vsub.s32 0, %v1809
    %v1811 = vrot.slane %v1806, %v1810
    %v1812 = vlaneseq
    %v1813 = vshrl.u32 %v1812, 7
    %v1814 = vsub.s32 1, %v1813
    %v1815 = vrot.slane %v1806, %v1814
    %v1816 = vlaneseq
    %v1817 = vshrl.u32 %v1816, 7
    %v1818 = vsub.s32 2, %v1817
    %v1819 = vrot.slane %v1806, %v1818
    %v1820 = vlaneseq
    %v1821 = vshrl.u32 %v1820, 7
    %v1822 = vsub.s32 3, %v1821
    %v1823 = vrot.slane %v1806, %v1822
    %v1828 = vmul.f32 %v1582, %v1811
    %v1829 = vmul.f32 %v1583, %v1815
    %v1830 = vmul.f32 %v1584, %v1819
    %v1831 = vmul.f32 %v1585, %v1823
    %v1832 = vmul.f32 %v1586, %v1811
    %v1833 = vmul.f32 %v1587, %v1815
    %v1834 = vmul.f32 %v1588, %v1819
    %v1835 = vmul.f32 %v1589, %v1823
    %1836 = vrot.lane.b32.xlu0 %v1582, 127
    %v1837 = vpop.permute.xlu0 %1836
    %1838 = vrot.lane.b32.xlu0 %v1586, 127
    %v1839 = vpop.permute.xlu0 %1838
    %1840 = vrot.lane.b32.xlu0 %v1583, 127
    %v1841 = vpop.permute.xlu0 %1840
    %1842 = vrot.lane.b32.xlu0 %v1587, 127
    %v1843 = vpop.permute.xlu0 %1842
    %1844 = vrot.lane.b32.xlu0 %v1584, 127
    %v1845 = vpop.permute.xlu0 %1844
    %1846 = vrot.lane.b32.xlu0 %v1588, 127
    %v1847 = vpop.permute.xlu0 %1846
    %1848 = vrot.lane.b32.xlu0 %v1585, 127
    %v1849 = vpop.permute.xlu0 %1848
    %1850 = vrot.lane.b32.xlu0 %v1589, 127
    %v1851 = vpop.permute.xlu0 %1850
    %v1852 = vsel %vm426, %v1845, %v1849
    %v1853 = vsel %vm426, %v1847, %v1851
    %v1854 = vsel %vm426, %v1841, %v1845
    %v1855 = vsel %vm426, %v1843, %v1847
    %v1856 = vsel %vm426, %v1837, %v1841
    %v1857 = vsel %vm426, %v1839, %v1843
    %v1858 = vsel %vm426, %v1849, %v1837
    %v1859 = vsel %vm426, %v1851, %v1839
    %v1860 = vld [vmem:[%s435] ss:$8 sm:$0xf]
    %v1862 = vlaneseq
    %v1863 = vshrl.u32 %v1862, 7
    %v1864 = vsub.s32 0, %v1863
    %v1865 = vrot.slane %v1860, %v1864
    %v1866 = vlaneseq
    %v1867 = vshrl.u32 %v1866, 7
    %v1868 = vsub.s32 1, %v1867
    %v1869 = vrot.slane %v1860, %v1868
    %v1870 = vlaneseq
    %v1871 = vshrl.u32 %v1870, 7
    %v1872 = vsub.s32 2, %v1871
    %v1873 = vrot.slane %v1860, %v1872
    %v1874 = vlaneseq
    %v1875 = vshrl.u32 %v1874, 7
    %v1876 = vsub.s32 3, %v1875
    %v1877 = vrot.slane %v1860, %v1876
    %v1882 = vmul.f32 %v1856, %v1865
    %v1883 = vmul.f32 %v1854, %v1869
    %v1884 = vmul.f32 %v1852, %v1873
    %v1885 = vmul.f32 %v1858, %v1877
    %v1886 = vmul.f32 %v1857, %v1865
    %v1887 = vmul.f32 %v1855, %v1869
    %v1888 = vmul.f32 %v1853, %v1873
    %v1889 = vmul.f32 %v1859, %v1877
    %1890 = vrot.lane.b32.xlu0 %v1582, 113
    %v1891 = vpop.permute.xlu0 %1890
    %1892 = vrot.lane.b32.xlu0 %v1586, 113
    %v1893 = vpop.permute.xlu0 %1892
    %1894 = vrot.lane.b32.xlu0 %v1583, 113
    %v1895 = vpop.permute.xlu0 %1894
    %1896 = vrot.lane.b32.xlu0 %v1587, 113
    %v1897 = vpop.permute.xlu0 %1896
    %1898 = vrot.lane.b32.xlu0 %v1584, 113
    %v1899 = vpop.permute.xlu0 %1898
    %1900 = vrot.lane.b32.xlu0 %v1588, 113
    %v1901 = vpop.permute.xlu0 %1900
    %1902 = vrot.lane.b32.xlu0 %v1585, 113
    %v1903 = vpop.permute.xlu0 %1902
    %1904 = vrot.lane.b32.xlu0 %v1589, 113
    %v1905 = vpop.permute.xlu0 %1904
    %v1906 = vsel %vm482, %v1899, %v1903
    %v1907 = vsel %vm482, %v1901, %v1905
    %v1908 = vsel %vm482, %v1895, %v1899
    %v1909 = vsel %vm482, %v1897, %v1901
    %v1910 = vsel %vm482, %v1891, %v1895
    %v1911 = vsel %vm482, %v1893, %v1897
    %v1912 = vsel %vm482, %v1903, %v1891
    %v1913 = vsel %vm482, %v1905, %v1893
    %v1914 = vld [vmem:[%s491] ss:$8 sm:$0xf]
    %v1916 = vlaneseq
    %v1917 = vshrl.u32 %v1916, 7
    %v1918 = vsub.s32 0, %v1917
    %v1919 = vrot.slane %v1914, %v1918
    %v1920 = vlaneseq
    %v1921 = vshrl.u32 %v1920, 7
    %v1922 = vsub.s32 1, %v1921
    %v1923 = vrot.slane %v1914, %v1922
    %v1924 = vlaneseq
    %v1925 = vshrl.u32 %v1924, 7
    %v1926 = vsub.s32 2, %v1925
    %v1927 = vrot.slane %v1914, %v1926
    %v1928 = vlaneseq
    %v1929 = vshrl.u32 %v1928, 7
    %v1930 = vsub.s32 3, %v1929
    %v1931 = vrot.slane %v1914, %v1930
    %v1936 = vmul.f32 %v1910, %v1919
    %v1937 = vmul.f32 %v1908, %v1923
    %v1938 = vmul.f32 %v1906, %v1927
    %v1939 = vmul.f32 %v1912, %v1931
    %v1940 = vmul.f32 %v1911, %v1919
    %v1941 = vmul.f32 %v1909, %v1923
    %v1942 = vmul.f32 %v1907, %v1927
    %v1943 = vmul.f32 %v1913, %v1931
    %1944 = vrot.lane.b32.xlu0 %v1582, 112
    %v1945 = vpop.permute.xlu0 %1944
    %1946 = vrot.lane.b32.xlu0 %v1586, 112
    %v1947 = vpop.permute.xlu0 %1946
    %1948 = vrot.lane.b32.xlu0 %v1583, 112
    %v1949 = vpop.permute.xlu0 %1948
    %1950 = vrot.lane.b32.xlu0 %v1587, 112
    %v1951 = vpop.permute.xlu0 %1950
    %1952 = vrot.lane.b32.xlu0 %v1584, 112
    %v1953 = vpop.permute.xlu0 %1952
    %1954 = vrot.lane.b32.xlu0 %v1588, 112
    %v1955 = vpop.permute.xlu0 %1954
    %1956 = vrot.lane.b32.xlu0 %v1585, 112
    %v1957 = vpop.permute.xlu0 %1956
    %1958 = vrot.lane.b32.xlu0 %v1589, 112
    %v1959 = vpop.permute.xlu0 %1958
    %v1960 = vsel %vm538, %v1953, %v1957
    %v1961 = vsel %vm538, %v1955, %v1959
    %v1962 = vsel %vm538, %v1949, %v1953
    %v1963 = vsel %vm538, %v1951, %v1955
    %v1964 = vsel %vm538, %v1945, %v1949
    %v1965 = vsel %vm538, %v1947, %v1951
    %v1966 = vsel %vm538, %v1957, %v1945
    %v1967 = vsel %vm538, %v1959, %v1947
    %v1968 = vld [vmem:[%s547] ss:$8 sm:$0xf]
    %v1970 = vlaneseq
    %v1971 = vshrl.u32 %v1970, 7
    %v1972 = vsub.s32 0, %v1971
    %v1973 = vrot.slane %v1968, %v1972
    %v1974 = vlaneseq
    %v1975 = vshrl.u32 %v1974, 7
    %v1976 = vsub.s32 1, %v1975
    %v1977 = vrot.slane %v1968, %v1976
    %v1978 = vlaneseq
    %v1979 = vshrl.u32 %v1978, 7
    %v1980 = vsub.s32 2, %v1979
    %v1981 = vrot.slane %v1968, %v1980
    %v1982 = vlaneseq
    %v1983 = vshrl.u32 %v1982, 7
    %v1984 = vsub.s32 3, %v1983
    %v1985 = vrot.slane %v1968, %v1984
    %v1990 = vmul.f32 %v1964, %v1973
    %v1991 = vmul.f32 %v1962, %v1977
    %v1992 = vmul.f32 %v1960, %v1981
    %v1993 = vmul.f32 %v1966, %v1985
    %v1994 = vmul.f32 %v1965, %v1973
    %v1995 = vmul.f32 %v1963, %v1977
    %v1996 = vmul.f32 %v1961, %v1981
    %v1997 = vmul.f32 %v1967, %v1985
    %1998 = vrot.lane.b32.xlu0 %v1582, 111
    %v1999 = vpop.permute.xlu0 %1998
    %2000 = vrot.lane.b32.xlu0 %v1586, 111
    %v2001 = vpop.permute.xlu0 %2000
    %2002 = vrot.lane.b32.xlu0 %v1583, 111
    %v2003 = vpop.permute.xlu0 %2002
    %2004 = vrot.lane.b32.xlu0 %v1587, 111
    %v2005 = vpop.permute.xlu0 %2004
    %2006 = vrot.lane.b32.xlu0 %v1584, 111
    %v2007 = vpop.permute.xlu0 %2006
    %2008 = vrot.lane.b32.xlu0 %v1588, 111
    %v2009 = vpop.permute.xlu0 %2008
    %2010 = vrot.lane.b32.xlu0 %v1585, 111
    %v2011 = vpop.permute.xlu0 %2010
    %2012 = vrot.lane.b32.xlu0 %v1589, 111
    %v2013 = vpop.permute.xlu0 %2012
    %v2014 = vsel %vm594, %v2007, %v2011
    %v2015 = vsel %vm594, %v2009, %v2013
    %v2016 = vsel %vm594, %v2003, %v2007
    %v2017 = vsel %vm594, %v2005, %v2009
    %v2018 = vsel %vm594, %v1999, %v2003
    %v2019 = vsel %vm594, %v2001, %v2005
    %v2020 = vsel %vm594, %v2011, %v1999
    %v2021 = vsel %vm594, %v2013, %v2001
    %v2022 = vld [vmem:[%s603] ss:$8 sm:$0xf]
    %v2024 = vlaneseq
    %v2025 = vshrl.u32 %v2024, 7
    %v2026 = vsub.s32 0, %v2025
    %v2027 = vrot.slane %v2022, %v2026
    %v2028 = vlaneseq
    %v2029 = vshrl.u32 %v2028, 7
    %v2030 = vsub.s32 1, %v2029
    %v2031 = vrot.slane %v2022, %v2030
    %v2032 = vlaneseq
    %v2033 = vshrl.u32 %v2032, 7
    %v2034 = vsub.s32 2, %v2033
    %v2035 = vrot.slane %v2022, %v2034
    %v2036 = vlaneseq
    %v2037 = vshrl.u32 %v2036, 7
    %v2038 = vsub.s32 3, %v2037
    %v2039 = vrot.slane %v2022, %v2038
    %v2044 = vmul.f32 %v2018, %v2027
    %v2045 = vmul.f32 %v2016, %v2031
    %v2046 = vmul.f32 %v2014, %v2035
    %v2047 = vmul.f32 %v2020, %v2039
    %v2048 = vmul.f32 %v2019, %v2027
    %v2049 = vmul.f32 %v2017, %v2031
    %v2050 = vmul.f32 %v2015, %v2035
    %v2051 = vmul.f32 %v2021, %v2039
    %v2052 = vpack.c.bf16 %v1640, %v1636
    %v2053 = vpack.c.bf16 %v1641, %v1637
    %v2054 = vpack.c.bf16 %v1642, %v1638
    %v2055 = vpack.c.bf16 %v1643, %v1639
    %v2056 = vpack.c.bf16 %v1694, %v1690
    %v2057 = vpack.c.bf16 %v1695, %v1691
    %v2058 = vpack.c.bf16 %v1696, %v1692
    %v2059 = vpack.c.bf16 %v1697, %v1693
    %v2060 = vpack.c.bf16 %v1748, %v1744
    %v2061 = vpack.c.bf16 %v1749, %v1745
    %v2062 = vpack.c.bf16 %v1750, %v1746
    %v2063 = vpack.c.bf16 %v1751, %v1747
    %v2064 = vpack.c.bf16 %v1802, %v1798
    %v2065 = vpack.c.bf16 %v1803, %v1799
    %v2066 = vpack.c.bf16 %v1804, %v1800
    %v2067 = vpack.c.bf16 %v1805, %v1801
    %v2068 = vpack.c.bf16 %v1832, %v1828
    %v2069 = vpack.c.bf16 %v1833, %v1829
    %v2070 = vpack.c.bf16 %v1834, %v1830
    %v2071 = vpack.c.bf16 %v1835, %v1831
    %v2072 = vpack.c.bf16 %v1886, %v1882
    %v2073 = vpack.c.bf16 %v1887, %v1883
    %v2074 = vpack.c.bf16 %v1888, %v1884
    %v2075 = vpack.c.bf16 %v1889, %v1885
    %v2076 = vpack.c.bf16 %v1940, %v1936
    %v2077 = vpack.c.bf16 %v1941, %v1937
    %v2078 = vpack.c.bf16 %v1942, %v1938
    %v2079 = vpack.c.bf16 %v1943, %v1939
    %v2080 = vpack.c.bf16 %v1994, %v1990
    %v2081 = vpack.c.bf16 %v1995, %v1991
    %v2082 = vpack.c.bf16 %v1996, %v1992
    %v2083 = vpack.c.bf16 %v1997, %v1993
    %v2084 = vpack.c.bf16 %v2048, %v2044
    %v2085 = vpack.c.bf16 %v2049, %v2045
    %v2086 = vpack.c.bf16 %v2050, %v2046
    %v2087 = vpack.c.bf16 %v2051, %v2047
    %s2088 = scalar_lea.vmem %s3, 8
    %v2089 = vld [vmem:[%s2088] sm:$0xf]
    %v2092 = vunpack.c.l.s4 1983009808
    %v2093 = vunpack.c.0.s8 %v2092
    %v2094 = vlaneseq
    %v2095 = vshrl.u32 %v2094, 7
    %v2096 = vsub.s32 %v2093, %v2095
    %v2097 = vrot.slane %v2089, %v2096
    %v2098 = vcombine.high %v2097, %v2097
    %v2101 = vsel %vm681, %v2098, 0
    %2103 = vmatprep.subr.bf16.mxu0 %v2053
    %2104 = vmatpush1.bf16.msra.mxu0 %v2052
    %2105 = vmatprep.subr.bf16.mxu0 %v2057
    %2106 = vmatpush1.bf16.msra.mxu0 %v2056
    %2107 = vmatprep.subr.bf16.mxu0 %v2061
    %2108 = vmatpush1.bf16.msra.mxu0 %v2060
    %2109 = vmatprep.subr.bf16.mxu0 %v2065
    %2110 = vmatpush1.bf16.msra.mxu0 %v2064
    %2111 = vmatprep.subr.bf16.mxu0 %v2069
    %2112 = vmatpush1.bf16.msra.mxu0 %v2068
    %2113 = vmatprep.subr.bf16.mxu0 %v2073
    %2114 = vmatpush1.bf16.msra.mxu0 %v2072
    %2115 = vmatprep.subr.bf16.mxu0 %v2077
    %2116 = vmatpush1.bf16.msra.mxu0 %v2076
    %2117 = vmatprep.subr.bf16.mxu0 %v2081
    %2118 = vmatpush1.bf16.msra.mxu0 %v2080
    %2119 = vmatprep.subr.bf16.mxu0 %v2085
    %2120 = vmatpush1.bf16.msra.mxu0 %v2084
    %2121 = vmatprep.subr.bf16.mxu0 0
    %2122 = vmatpush1.bf16.msra.mxu0 0
    %2123 = vmatprep.subr.bf16.mxu0 0
    %2124 = vmatpush1.bf16.msra.mxu0 0
    %2125 = vmatprep.subr.bf16.mxu0 0
    %2126 = vmatpush1.bf16.msra.mxu0 0
    %2127 = vmatprep.subr.bf16.mxu0 0
    %2128 = vmatpush1.bf16.msra.mxu0 0
    %2129 = vmatprep.subr.bf16.mxu0 0
    %2130 = vmatpush1.bf16.msra.mxu0 0
    %2131 = vmatprep.subr.bf16.mxu0 0
    %2132 = vmatpush1.bf16.msra.mxu0 0
    %2133 = vmatprep.subr.bf16.mxu0 0
    %2134 = vmatpush1.bf16.msra.mxu0 0
    %2135 = vmatprep.mubr.bf16.mxu0 %v2101
    %2136 = vmatmul.mubr.bf16.gmra.mrb[0].mxu0 %v2097
    %v2137 = vpop.f32.mrb[0].mxu0
    %v2138 = vadd.f32 0.0, %v2137
    %v2139 = vpop.f32.mrb[0].mxu0
    %v2140 = vadd.f32 0.0, %v2139
    %v2141 = vpop.f32.mrb[0].mxu0
    %v2142 = vpop.f32.mrb[0].mxu0
    %2143 = vdwg.mxu0
    %2144 = vmatprep.subr.bf16.mxu0 %v2055
    %2145 = vmatpush1.bf16.msra.mxu0 %v2054
    %2146 = vmatprep.subr.bf16.mxu0 %v2059
    %2147 = vmatpush1.bf16.msra.mxu0 %v2058
    %2148 = vmatprep.subr.bf16.mxu0 %v2063
    %2149 = vmatpush1.bf16.msra.mxu0 %v2062
    %2150 = vmatprep.subr.bf16.mxu0 %v2067
    %2151 = vmatpush1.bf16.msra.mxu0 %v2066
    %2152 = vmatprep.subr.bf16.mxu0 %v2071
    %2153 = vmatpush1.bf16.msra.mxu0 %v2070
    %2154 = vmatprep.subr.bf16.mxu0 %v2075
    %2155 = vmatpush1.bf16.msra.mxu0 %v2074
    %2156 = vmatprep.subr.bf16.mxu0 %v2079
    %2157 = vmatpush1.bf16.msra.mxu0 %v2078
    %2158 = vmatprep.subr.bf16.mxu0 %v2083
    %2159 = vmatpush1.bf16.msra.mxu0 %v2082
    %2160 = vmatprep.subr.bf16.mxu0 %v2087
    %2161 = vmatpush1.bf16.msra.mxu0 %v2086
    %2162 = vmatprep.subr.bf16.mxu0 0
    %2163 = vmatpush1.bf16.msra.mxu0 0
    %2164 = vmatprep.subr.bf16.mxu0 0
    %2165 = vmatpush1.bf16.msra.mxu0 0
    %2166 = vmatprep.subr.bf16.mxu0 0
    %2167 = vmatpush1.bf16.msra.mxu0 0
    %2168 = vmatprep.subr.bf16.mxu0 0
    %2169 = vmatpush1.bf16.msra.mxu0 0
    %2170 = vmatprep.subr.bf16.mxu0 0
    %2171 = vmatpush1.bf16.msra.mxu0 0
    %2172 = vmatprep.subr.bf16.mxu0 0
    %2173 = vmatpush1.bf16.msra.mxu0 0
    %2174 = vmatprep.subr.bf16.mxu0 0
    %2175 = vmatpush1.bf16.msra.mxu0 0
    %2176 = vmatprep.mubr.bf16.mxu0 %v2101
    %2177 = vmatmul.mubr.bf16.gmra.mrb[0].mxu0 %v2097
    %v2178 = vpop.f32.mrb[0].mxu0
    %v2179 = vadd.f32 0.0, %v2178
    %v2180 = vpop.f32.mrb[0].mxu0
    %v2181 = vadd.f32 0.0, %v2180
    %v2182 = vpop.f32.mrb[0].mxu0
    %v2183 = vpop.f32.mrb[0].mxu0
    %2184 = vdwg.mxu0
    %v2189 = vrot.slane %v2138, 4
    %v2190 = vrot.slane %v2140, 4
    %v2191 = vrot.slane %v2179, 4
    %v2192 = vrot.slane %v2181, 4
    %2197 = vst [vmem:[#allocation5 + $0x20] sm:$0xf0] %v2189
    %2198 = vst [vmem:[#allocation5 + $0x28] sm:$0xf0] %v2190
    %2199 = vst [vmem:[#allocation5 + $0x30] sm:$0xf0] %v2191
    %2200 = vst [vmem:[#allocation5 + $0x38] sm:$0xf0] %v2192
    // Predicated region
    $region26: #{tpu_custom_call.1} parent=1 // pred_check
      _
    $region27: #{tpu_custom_call.1} parent=1 // pred_check_branch
      %2202 = sbr.rel (0) target = $region29
    $region28: #{tpu_custom_call.1} parent=1 // pred_region
      %s2204 = ssub.s32 1024, 1024
      %2205 = vsyncadd [#allocation4], %s2204
      %s2206 = sshll.u32 [#allocation5], 4
      %s2207 = int_to_ptr.vmem [resolvable:$true] %s2206
      %2212 = dma.vmem_to_hbm [thread:$0]  %s2207, 1024, %s5, [#allocation4], 512, 512, 32
    $region29: #{tpu_custom_call.1} parent=1 // pred_fallthru
      _
    // Predicated region
    $region30: #{tpu_custom_call.1} parent=1 // pred_check
      _
    $region31: #{tpu_custom_call.1} parent=1 // pred_check_branch
      %2214 = sbr.rel (0) target = $region33
    $region32: #{tpu_custom_call.1} parent=1 // pred_region
      %2215 = dma.done [#allocation4], 1024
    $region33: #{tpu_custom_call.1} parent=1 // pred_fallthru
      _
    %2216 = vsyncpa [#allocation3], 1
    %2217 = vsyncpa [#allocation4], 1

</llo_original>
